<compile_context>
chip_gen: v5e
topology: v5e:2x2
jax: 0.10.0
libtpu: 0.0.40
codegen_flags: <defaults>
</compile_context>

<pallas_src>
import functools

import jax
import jax.numpy as jnp
from jax import lax
from jax.experimental import pallas as pl
from jax.experimental.pallas import tpu as pltpu


def _round_up(n, m):
    return ((n + m - 1) // m) * m


def _tpu_vmem_and_cores():
    """Per-TensorCore VMEM capacity and TC count (defensive: falls back safely)."""
    vmem_cap = 64 << 20          # conservative default = v7x per-core VMEM
    cores = 0
    try:
        info = pltpu.get_tpu_info()
        vmem_cap = int(info.vmem_capacity_bytes)
        cores = int(getattr(info, "num_cores", 0) or getattr(info, "core_count", 0) or 0)
    except Exception:
        pass
    if cores <= 0:
        # v7x (64 MiB VMEM per TensorCore) is the 2-TensorCore generation.
        cores = 2 if vmem_cap <= (64 << 20) else 1
    return vmem_cap, cores


def _topk_gates(probs, k):
    """Keep the top-k probabilities per row (first-index tie break), zero elsewhere."""
    E = probs.shape[-1]
    col = lax.broadcasted_iota(jnp.int32, probs.shape, probs.ndim - 1)
    remaining = probs
    sel = jnp.zeros_like(probs)
    for _ in range(k):
        m = jnp.max(remaining, axis=-1, keepdims=True)
        idx = jnp.min(jnp.where(remaining == m, col, E), axis=-1, keepdims=True)
        pick = col == idx
        sel = jnp.where(pick, probs, sel)
        remaining = jnp.where(pick, -jnp.inf, remaining)
    return sel


def _moe_kernel(x_ref, wr_ref, br_ref, we_ref, be_ref, out_ref,
                gates_sc, xb_sc, *, k, resident):
    """Fused router + expert pass.  Grid = (token_tiles, real_experts).

    The output tile is resident across the expert ('arbitrary') axis and accumulates
    sum_e (x @ W_e + b_e) * gate_e in f32.  Router math (f32 logits/softmax/top-k) and
    the single f32->bf16 cast of the x tile run once per token tile at e == 0.
    """
    e = pl.program_id(1)

    @pl.when(e == 0)
    def _():
        # Router kept in f32 so top-k selection matches the f32 reference exactly.
        logits = jnp.dot(x_ref[...], wr_ref[...], preferred_element_type=jnp.float32)
        logits = logits + br_ref[...]
        probs = jax.nn.softmax(logits, axis=-1)
        gates_sc[...] = _topk_gates(probs, k)           # (tile_m, E); hole column unused
        # One bf16 cast per token tile; every expert step reuses it as the MXU LHS.
        xb_sc[...] = x_ref[...].astype(jnp.bfloat16)
        out_ref[...] = jnp.zeros_like(out_ref)

    # Expert e's gate column via iota-compare + reduce (XLU); gates stay in VMEM.
    col = lax.broadcasted_iota(jnp.int32, gates_sc.shape, 1)
    g = jnp.sum(jnp.where(col == e, gates_sc[...], 0.0), axis=-1, keepdims=True)

    # NOTE: no pre-matmul input masking -- row-wise, ((mask*x) @ W + b) * g equals
    # ((x @ W) + b) * g because g == 0 exactly where the mask is 0.
    w = we_ref[e] if resident else we_ref[0]            # (D, D) bf16 expert weight
    b = be_ref[e]                                       # (1, D) f32 expert bias
    y = jnp.dot(xb_sc[...], w, preferred_element_type=jnp.float32) + b
    out_ref[...] += y * g


def moe_block_forward(x, wr, br, we, be, *, k, hole, tile_m=256):
    """x: [B, S, D] f32.  wr: [D, E], br: [1, E] router params (E includes the hole
    slot if hole=True).  we: [E_real, D, D], be: [E_real, 1, D] expert params."""
    B, S, D = x.shape
    E = wr.shape[1]
    E_real = we.shape[0]
    assert E == E_real + int(hole)
    M = B * S

    vmem_cap, n_cores = _tpu_vmem_and_cores()
    # Scoped-VMEM target: leave compiler-scratch headroom below physical capacity.
    vmem_target = (40 << 20) if vmem_cap <= (64 << 20) else (96 << 20)

    # --- Token tile: MXU-aligned and as large as sensible (amortizes per-step overhead
    # and weight re-streaming); multiple of 8 sublanes; M is padded up to a tile multiple.
    tile_m = min(tile_m, _round_up(M, 8))
    tile_m = max(8, tile_m - tile_m % 8)

    def _tile_bytes(tm):
        return (2 * tm * D * 4        # x tile (f32, double-buffered)
                + 2 * tm * D * 4      # out tile (f32, double-buffered)
                + tm * D * 2          # bf16 x scratch
                + tm * E * 4)         # gate scratch

    while tile_m > 8 and _tile_bytes(tile_m) > vmem_target // 2:
        tile_m = max(8, _round_up(tile_m // 2, 8))

    n_tiles = -(-M // tile_m)
    # Only the 2-TensorCore generation benefits from splitting a single token tile;
    # on v5e/v6e halving just underfills the MXU and doubles grid steps.
    if n_cores >= 2 and n_tiles < 2 and tile_m >= 16:
        tile_m = max(8, _round_up(tile_m // 2, 8))
        n_tiles = -(-M // tile_m)
    M_pad = n_tiles * tile_m

    x2d = x.reshape(M, D)
    if M_pad != M:
        x2d = jnp.pad(x2d, ((0, M_pad - M), (0, 0)))    # padded rows sliced off below

    # --- Expert weight residency (bf16), counting default double-buffering of the
    # constant-index 'resident' block; generation-aware via vmem_target.
    we_bf16 = we.astype(jnp.bfloat16)                   # halve weight DMA, f32 accumulation
    w_bytes = E_real * D * D * 2
    const_bytes = 2 * (D * E * 4 + E * 4) + 2 * E_real * D * 4   # router params + biases
    resident = (2 * w_bytes + _tile_bytes(tile_m) + const_bytes + (2 << 20)) <= vmem_target

    if resident:
        we_spec = pl.BlockSpec((E_real, D, D), lambda i, e: (0, 0, 0))
        w_vmem = 2 * w_bytes
    else:
        # Streamed per expert; 3-deep pipelining hides the D*D weight DMA under the matmul.
        we_spec = pl.BlockSpec((1, D, D), lambda i, e: (e, 0, 0),
                               pipeline_mode=pl.Buffered(3))
        w_vmem = 3 * D * D * 2

    est = _tile_bytes(tile_m) + const_bytes + w_vmem
    vmem_limit = None
    if est + (4 << 20) > (32 << 20):                    # default scoped limit ~32 MiB
        vmem_limit = int(min(est + (8 << 20), vmem_target))

    out2d = pl.pallas_call(
        functools.partial(_moe_kernel, k=k, resident=resident),
        out_shape=jax.ShapeDtypeStruct((M_pad, D), jnp.float32),
        grid_spec=pltpu.PrefetchScalarGridSpec(
            num_scalar_prefetch=0,
            grid=(M_pad // tile_m, E_real),
            in_specs=[
                pl.BlockSpec((tile_m, D), lambda i, e: (i, 0)),        # x tokens (resident over e)
                pl.BlockSpec((D, E), lambda i, e: (0, 0)),             # router weight (f32, tiny)
                pl.BlockSpec((1, E), lambda i, e: (0, 0)),             # router bias
                we_spec,                                               # expert weights (bf16)
                pl.BlockSpec((E_real, 1, D), lambda i, e: (0, 0, 0)),  # expert biases (resident)
            ],
            out_specs=pl.BlockSpec((tile_m, D), lambda i, e: (i, 0)),
            scratch_shapes=[
                pltpu.VMEM((tile_m, E), jnp.float32),    # top-k gates for the current tile
                pltpu.VMEM((tile_m, D), jnp.bfloat16),   # bf16 x (one cast per token tile)
            ],
        ),
        compiler_params=pltpu.CompilerParams(
            dimension_semantics=("parallel", "arbitrary"),
            vmem_limit_bytes=vmem_limit),
    )(x2d, wr, br, we_bf16, be)

    return out2d[:M].reshape(B, S, D)


def moe_reference(x, wr, br, we, be, *, k, hole):
    """Pure-JAX f32 reference mirroring MoEBlock.forward semantics (sum aggregation)."""
    del hole
    E_real = we.shape[0]
    logits = jnp.einsum('bsd,de->bse', x, wr) + br[0]
    probs = jax.nn.softmax(logits, axis=-1)
    gates = _topk_gates(probs, k)                 # (B, S, E); hole slot participates in top-k
    out = jnp.zeros_like(x)
    for e in range(E_real):                       # Hole expert (last slot) skipped, like PyTorch
        g = gates[..., e:e + 1]
        masked_x = jnp.where(g > 0.0, x, 0.0)
        y = masked_x @ we[e] + be[e]
        out = out + y * g
    return out


if __name__ == "__main__":
    B, S, D = 2, 128, 128                     # M = 256 tokens
    num_real_experts = 3
    hole = True                               # +1 router slot that drops its tokens
    E = num_real_experts + int(hole)
    k = 2

    key = jax.random.PRNGKey(0)
    kx, kwr, kbr, kwe, kbe = jax.random.split(key, 5)
    x = jax.random.normal(kx, (B, S, D), jnp.float32)
    wr = jax.random.normal(kwr, (D, E), jnp.float32) * (1.0 / D ** 0.5)
    br = jax.random.normal(kbr, (1, E), jnp.float32) * 0.01
    we = jax.random.normal(kwe, (num_real_experts, D, D), jnp.float32) * (1.0 / D ** 0.5)
    be = jax.random.normal(kbe, (num_real_experts, 1, D), jnp.float32) * 0.01

    out = moe_block_forward(x, wr, br, we, be, k=k, hole=hole)
    out = jax.block_until_ready(out)

    ref = moe_reference(x, wr, br, we, be, k=k, hole=hole)
    assert out.shape == (B, S, D)
    err = float(jnp.max(jnp.abs(out - ref)))
    # bf16 expert matmuls vs f32 reference -> loosened tolerance (accumulation is f32,
    # router/top-k selection is f32 and matches the reference exactly).
    assert jnp.allclose(out, ref, atol=5e-2, rtol=5e-2), err
    print("KERNEL_OK")
</pallas_src>

<mosaic_0001>
module attributes {stable_mosaic.version = 11 : i64} {
  func.func @_moe_kernel(%arg0: i32, %arg1: i32, %arg2: memref<128x128xf32, #tpu.memory_space<vmem>>, %arg3: memref<128x4xf32, #tpu.memory_space<vmem>>, %arg4: memref<1x4xf32, #tpu.memory_space<vmem>>, %arg5: memref<3x128x128xbf16, #tpu.memory_space<vmem>>, %arg6: memref<3x1x128xf32, #tpu.memory_space<vmem>>, %arg7: memref<128x128xf32, #tpu.memory_space<vmem>>, %arg8: memref<128x4xf32, #tpu.memory_space<vmem>>, %arg9: memref<128x128xbf16, #tpu.memory_space<vmem>>) attributes {dimension_semantics = [#tpu.dimension_semantics<parallel>, #tpu.dimension_semantics<arbitrary>], iteration_bounds = array<i64: 2, 3>, scalar_prefetch = 0 : i64, scratch_operands = 2 : i64, tpu.core_type = #tpu.core_type<tc>, window_params = [{transform_indices = @transform_0, window_bounds = array<i64: 128, 128>}, {pipeline_mode = #tpu.pipeline_mode<synchronous>, transform_indices = @transform_1, window_bounds = array<i64: 128, 4>}, {pipeline_mode = #tpu.pipeline_mode<synchronous>, transform_indices = @transform_2, window_bounds = array<i64: 1, 4>}, {pipeline_mode = #tpu.pipeline_mode<synchronous>, transform_indices = @transform_3, window_bounds = array<i64: 3, 128, 128>}, {pipeline_mode = #tpu.pipeline_mode<synchronous>, transform_indices = @transform_4, window_bounds = array<i64: 3, 1, 128>}, {transform_indices = @transform_5, window_bounds = array<i64: 128, 128>}]} {
    %c0_i32 = arith.constant 0 : i32
    %0 = arith.cmpi eq, %arg1, %c0_i32 : i32
    %1 = arith.extui %0 : i1 to i32
    %c0_i32_0 = arith.constant 0 : i32
    %2 = arith.cmpi ne, %1, %c0_i32_0 : i32
    scf.if %2 {
      %c0_14 = arith.constant 0 : index
      %c0_15 = arith.constant 0 : index
      %26 = vector.load %arg2[%c0_14, %c0_15] : memref<128x128xf32, #tpu.memory_space<vmem>>, vector<128x128xf32>
      %c0_16 = arith.constant 0 : index
      %c0_17 = arith.constant 0 : index
      %27 = vector.load %arg3[%c0_16, %c0_17] : memref<128x4xf32, #tpu.memory_space<vmem>>, vector<128x4xf32>
      %cst_18 = arith.constant dense<0.000000e+00> : vector<128x4xf32>
      %28 = tpu.matmul %26, %27, %cst_18 {dimension_numbers = #tpu.dot_dimension_numbers<[1], [0], [0], [1], [0, 0, 1, 1], [], []>} : vector<128x128xf32>, vector<128x4xf32>, vector<128x4xf32> -> vector<128x4xf32>
      %c0_19 = arith.constant 0 : index
      %c0_20 = arith.constant 0 : index
      %29 = vector.load %arg4[%c0_19, %c0_20] : memref<1x4xf32, #tpu.memory_space<vmem>>, vector<1x4xf32>
      %30 = vector.broadcast %29 : vector<1x4xf32> to vector<128x4xf32>
      %31 = arith.addf %28, %30 : vector<128x4xf32>
      %cst_21 = arith.constant dense<0xFF800000> : vector<128xf32>
      %32 = vector.multi_reduction <maximumf>, %31, %cst_21 [1] : vector<128x4xf32> to vector<128xf32>
      %cst_22 = arith.constant 0xFF800000 : f32
      %33 = vector.broadcast %cst_22 : f32 to vector<128xf32>
      %34 = arith.maximumf %33, %32 : vector<128xf32>
      %35 = vector.shape_cast %34 : vector<128xf32> to vector<128x1xf32>
      %36 = vector.broadcast %35 : vector<128x1xf32> to vector<128x4xf32>
      %37 = arith.subf %31, %36 : vector<128x4xf32>
      %38 = math.exp %37 : vector<128x4xf32>
      %cst_23 = arith.constant dense<0.000000e+00> : vector<128xf32>
      %39 = vector.multi_reduction <add>, %38, %cst_23 [1] : vector<128x4xf32> to vector<128xf32>
      %40 = vector.shape_cast %39 : vector<128xf32> to vector<128x1xf32>
      %41 = vector.broadcast %40 : vector<128x1xf32> to vector<128x4xf32>
      %42 = arith.divf %38, %41 : vector<128x4xf32>
      %43 = tpu.iota {dimensions = array<i32: 1>} : vector<128x4xi32>
      %cst_24 = arith.constant 0.000000e+00 : f32
      %44 = vector.broadcast %cst_24 : f32 to vector<128x4xf32>
      %cst_25 = arith.constant dense<0xFF800000> : vector<128xf32>
      %45 = vector.multi_reduction <maximumf>, %42, %cst_25 [1] : vector<128x4xf32> to vector<128xf32>
      %46 = vector.shape_cast %45 : vector<128xf32> to vector<128x1xf32>
      %47 = vector.broadcast %46 : vector<128x1xf32> to vector<128x4xf32>
      %48 = arith.cmpf oeq, %42, %47 : vector<128x4xf32>
      %c4_i32 = arith.constant 4 : i32
      %49 = vector.broadcast %c4_i32 : i32 to vector<128x4xi32>
      %50 = arith.select %48, %43, %49 : vector<128x4xi1>, vector<128x4xi32>
      %cst_26 = arith.constant dense<2147483647> : vector<128xi32>
      %51 = vector.multi_reduction <minsi>, %50, %cst_26 [1] : vector<128x4xi32> to vector<128xi32>
      %52 = vector.shape_cast %51 : vector<128xi32> to vector<128x1xi32>
      %53 = vector.broadcast %52 : vector<128x1xi32> to vector<128x4xi32>
      %54 = arith.cmpi eq, %43, %53 : vector<128x4xi32>
      %55 = arith.select %54, %42, %44 : vector<128x4xi1>, vector<128x4xf32>
      %cst_27 = arith.constant 0xFF800000 : f32
      %56 = vector.broadcast %cst_27 : f32 to vector<128x4xf32>
      %57 = arith.select %54, %56, %42 : vector<128x4xi1>, vector<128x4xf32>
      %cst_28 = arith.constant dense<0xFF800000> : vector<128xf32>
      %58 = vector.multi_reduction <maximumf>, %57, %cst_28 [1] : vector<128x4xf32> to vector<128xf32>
      %59 = vector.shape_cast %58 : vector<128xf32> to vector<128x1xf32>
      %60 = vector.broadcast %59 : vector<128x1xf32> to vector<128x4xf32>
      %61 = arith.cmpf oeq, %57, %60 : vector<128x4xf32>
      %c4_i32_29 = arith.constant 4 : i32
      %62 = vector.broadcast %c4_i32_29 : i32 to vector<128x4xi32>
      %63 = arith.select %61, %43, %62 : vector<128x4xi1>, vector<128x4xi32>
      %cst_30 = arith.constant dense<2147483647> : vector<128xi32>
      %64 = vector.multi_reduction <minsi>, %63, %cst_30 [1] : vector<128x4xi32> to vector<128xi32>
      %65 = vector.shape_cast %64 : vector<128xi32> to vector<128x1xi32>
      %66 = vector.broadcast %65 : vector<128x1xi32> to vector<128x4xi32>
      %67 = arith.cmpi eq, %43, %66 : vector<128x4xi32>
      %68 = arith.select %67, %42, %55 : vector<128x4xi1>, vector<128x4xf32>
      %c0_31 = arith.constant 0 : index
      %c0_32 = arith.constant 0 : index
      %69 = vector.load %arg8[%c0_31, %c0_32] : memref<128x4xf32, #tpu.memory_space<vmem>>, vector<128x4xf32>
      tpu.vector_store %arg8[%c0_31, %c0_32], %68 {strides = array<i32>} : memref<128x4xf32, #tpu.memory_space<vmem>>, vector<128x4xf32>,
      %c0_33 = arith.constant 0 : index
      %c0_34 = arith.constant 0 : index
      %70 = vector.load %arg2[%c0_33, %c0_34] : memref<128x128xf32, #tpu.memory_space<vmem>>, vector<128x128xf32>
      %71 = arith.truncf %70 : vector<128x128xf32> to vector<128x128xbf16>
      %c0_35 = arith.constant 0 : index
      %c0_36 = arith.constant 0 : index
      %72 = vector.load %arg9[%c0_35, %c0_36] : memref<128x128xbf16, #tpu.memory_space<vmem>>, vector<128x128xbf16>
      tpu.vector_store %arg9[%c0_35, %c0_36], %71 {strides = array<i32>} : memref<128x128xbf16, #tpu.memory_space<vmem>>, vector<128x128xbf16>,
      %cst_37 = arith.constant 0.000000e+00 : f32
      %73 = vector.broadcast %cst_37 : f32 to vector<128x128xf32>
      %c0_38 = arith.constant 0 : index
      %c0_39 = arith.constant 0 : index
      %74 = vector.load %arg7[%c0_38, %c0_39] : memref<128x128xf32, #tpu.memory_space<vmem>>, vector<128x128xf32>
      tpu.vector_store %arg7[%c0_38, %c0_39], %73 {strides = array<i32>} : memref<128x128xf32, #tpu.memory_space<vmem>>, vector<128x128xf32>,
    } else {
    }
    %3 = tpu.iota {dimensions = array<i32: 1>} : vector<128x4xi32>
    %4 = vector.broadcast %arg1 : i32 to vector<128x4xi32>
    %5 = arith.cmpi eq, %3, %4 : vector<128x4xi32>
    %c0 = arith.constant 0 : index
    %c0_1 = arith.constant 0 : index
    %6 = vector.load %arg8[%c0, %c0_1] : memref<128x4xf32, #tpu.memory_space<vmem>>, vector<128x4xf32>
    %cst = arith.constant 0.000000e+00 : f32
    %7 = vector.broadcast %cst : f32 to vector<128x4xf32>
    %8 = arith.select %5, %6, %7 : vector<128x4xi1>, vector<128x4xf32>
    %cst_2 = arith.constant dense<0.000000e+00> : vector<128xf32>
    %9 = vector.multi_reduction <add>, %8, %cst_2 [1] : vector<128x4xf32> to vector<128xf32>
    %10 = vector.shape_cast %9 : vector<128xf32> to vector<128x1xf32>
    %11 = arith.index_cast %arg1 : i32 to index
    %c0_3 = arith.constant 0 : index
    %c0_4 = arith.constant 0 : index
    %12 = vector.load %arg5[%11, %c0_3, %c0_4] : memref<3x128x128xbf16, #tpu.memory_space<vmem>>, vector<1x128x128xbf16>
    %13 = vector.shape_cast %12 : vector<1x128x128xbf16> to vector<128x128xbf16>
    %14 = arith.index_cast %arg1 : i32 to index
    %c0_5 = arith.constant 0 : index
    %c0_6 = arith.constant 0 : index
    %15 = vector.load %arg6[%14, %c0_5, %c0_6] : memref<3x1x128xf32, #tpu.memory_space<vmem>>, vector<1x1x128xf32>
    %16 = vector.shape_cast %15 : vector<1x1x128xf32> to vector<1x128xf32>
    %c0_7 = arith.constant 0 : index
    %c0_8 = arith.constant 0 : index
    %17 = vector.load %arg9[%c0_7, %c0_8] : memref<128x128xbf16, #tpu.memory_space<vmem>>, vector<128x128xbf16>
    %cst_9 = arith.constant dense<0.000000e+00> : vector<128x128xf32>
    %18 = tpu.matmul %17, %13, %cst_9 {dimension_numbers = #tpu.dot_dimension_numbers<[1], [0], [0], [1], [0, 0, 1, 1], [], []>} : vector<128x128xbf16>, vector<128x128xbf16>, vector<128x128xf32> -> vector<128x128xf32>
    %19 = vector.broadcast %16 : vector<1x128xf32> to vector<128x128xf32>
    %20 = arith.addf %18, %19 : vector<128x128xf32>
    %c0_10 = arith.constant 0 : index
    %c0_11 = arith.constant 0 : index
    %21 = vector.load %arg7[%c0_10, %c0_11] : memref<128x128xf32, #tpu.memory_space<vmem>>, vector<128x128xf32>
    %22 = vector.broadcast %10 : vector<128x1xf32> to vector<128x128xf32>
    %23 = arith.mulf %20, %22 : vector<128x128xf32>
    %24 = arith.addf %21, %23 : vector<128x128xf32>
    %c0_12 = arith.constant 0 : index
    %c0_13 = arith.constant 0 : index
    %25 = vector.load %arg7[%c0_12, %c0_13] : memref<128x128xf32, #tpu.memory_space<vmem>>, vector<128x128xf32>
    tpu.vector_store %arg7[%c0_12, %c0_13], %24 {strides = array<i32>} : memref<128x128xf32, #tpu.memory_space<vmem>>, vector<128x128xf32>,
    return
  }
  func.func @transform_0(%arg0: i32, %arg1: i32) -> (i32, i32) {
    %c0_i32 = arith.constant 0 : i32
    %c0_i32_0 = arith.constant 0 : i32
    return %arg0, %c0_i32 : i32, i32
  }
  func.func @transform_1(%arg0: i32, %arg1: i32) -> (i32, i32) {
    %c0_i32 = arith.constant 0 : i32
    %c0_i32_0 = arith.constant 0 : i32
    %c0_i32_1 = arith.constant 0 : i32
    return %c0_i32, %c0_i32_0 : i32, i32
  }
  func.func @transform_2(%arg0: i32, %arg1: i32) -> (i32, i32) {
    %c0_i32 = arith.constant 0 : i32
    %c0_i32_0 = arith.constant 0 : i32
    %c0_i32_1 = arith.constant 0 : i32
    return %c0_i32, %c0_i32_0 : i32, i32
  }
  func.func @transform_3(%arg0: i32, %arg1: i32) -> (i32, i32, i32) {
    %c0_i32 = arith.constant 0 : i32
    %c0_i32_0 = arith.constant 0 : i32
    %c0_i32_1 = arith.constant 0 : i32
    %c0_i32_2 = arith.constant 0 : i32
    return %c0_i32, %c0_i32_0, %c0_i32_1 : i32, i32, i32
  }
  func.func @transform_4(%arg0: i32, %arg1: i32) -> (i32, i32, i32) {
    %c0_i32 = arith.constant 0 : i32
    %c0_i32_0 = arith.constant 0 : i32
    %c0_i32_1 = arith.constant 0 : i32
    %c0_i32_2 = arith.constant 0 : i32
    return %c0_i32, %c0_i32_0, %c0_i32_1 : i32, i32, i32
  }
  func.func @transform_5(%arg0: i32, %arg1: i32) -> (i32, i32) {
    %c0_i32 = arith.constant 0 : i32
    %c0_i32_0 = arith.constant 0 : i32
    return %arg0, %c0_i32 : i32, i32
  }
}

</mosaic_0001>

<llo_original>
// kernel: tpu_custom_call.1
$region0: #{tpu_custom_call.1}
  #allocation0 [shape = 'u32[]', space=smem, size = 0x4, offset = 0x4, fixed_abs, tag = 'smem constant byte address 0x4 - core index']
  #allocation1 [shape = 'u32[72,128]{1,0:T(1,128)}', space=vmem, size = 0x9000, scoped, tag = 'internal scratch']
  #allocation2 [shape = 'f32[128,4]{1,0:T(8,128)}', space=vmem, size = 0x10000, scoped, tag = 'scratch operand']
  #allocation3 [shape = 'bf16[128,128]{1,0:T(8,128)(2,1)}', space=vmem, size = 0x8000, scoped, tag = 'scratch operand']
  %s0 = inlined_call_operand.hbm [shape: f32[256,128], index: 0, kind: input, shape index: {}]
  %s1 = inlined_call_operand.vmem [shape: f32[128,4], index: 1, kind: input, shape index: {}]
  %s2 = inlined_call_operand.vmem [shape: f32[1,4], index: 2, kind: input, shape index: {}]
  %s3 = inlined_call_operand.hbm [shape: bf16[3,128,128], index: 3, kind: input, shape index: {}]
  %s4 = inlined_call_operand.vmem [shape: f32[3,1,128], index: 4, kind: input, shape index: {}]
  %s5 = inlined_call_operand.hbm [shape: f32[256,128], index: 5, kind: output, shape index: {}]
  %s6 = sld [smem:[#allocation0]]
  $region65: #{tpu_custom_call.1} parent=0
    _
  %s8 = ssub.s32 1, %s6
  %s9 = scalar_select 0, %s8, %s6
  $region1: #{tpu_custom_call.1} parent=0
    #allocation4 [shape = 'u8[131072]{0}', space=vmem, size = 0x20000, scoped, tag = 'input window, operand 0']
    #allocation5 [shape = 's32[2]{0}', space=sflag, size = 0x8, scoped, tag = 'scoped memory for tpu_custom_call.1']
    #allocation6 [shape = 's32[2]{0}', space=sflag, size = 0x8, scoped, tag = 'scoped memory for tpu_custom_call.1']
    #allocation7 [shape = 'u8[98304]{0}', space=vmem, size = 0x18000, scoped, tag = 'input window, operand 3, single buffered']
    #allocation8 [shape = 's32[1]{0}', space=sflag, size = 0x4, scoped, tag = 'scoped memory for tpu_custom_call.1']
    #allocation9 [shape = 'u8[131072]{0}', space=vmem, size = 0x20000, scoped, tag = 'output window, operand 0']
    %10 = vsyncpa [#allocation5], 0
    %s11 = scalar_lea.sflag [#allocation5], 1
    %12 = vsyncpa %s11, 0
    %13 = vsyncpa [#allocation8], 0
    %14 = vsyncpa [#allocation6], 0
    %s15 = scalar_lea.sflag [#allocation6], 1
    %16 = vsyncpa %s15, 0
    loop: start=0, step=1, limit=8
    $region2: #{tpu_custom_call.1} parent=1 // loop_pre_header
      _
    $region3: #{tpu_custom_call.1} parent=1 // loop_header
      %s18 = sphi 0, %s22
      %p19 = scmp.ge.s32.totalorder %s18, 8
      %s25 = sphi 0, %s37
      %s26 = sphi 0, %s33
      %s27 = sphi 0, %s25
      %s28 = sphi 0, %s26
      %s29 = sphi 0, %s27
      %s30 = sphi 0, %s28
      %s40 = sphi 0, %s42
      %s43 = sphi 0, %s40
      %s44 = sphi 0, %s43
      %s60 = sphi 0, %s44
      %s64 = sphi 0, %s64
      %s66 = sphi 0, %s64
      %s67 = sphi 0, %s66
      %s81 = sphi 0, %s67
      %s85 = sphi 0, %s85
      %s87 = sphi 0, %s85
      %s88 = sphi 0, %s87
      %s102 = sphi 0, %s88
      %s106 = sphi 0, %s106
      %s108 = sphi 0, %s106
      %s109 = sphi 0, %s108
      %s123 = sphi 0, %s109
      %s127 = sphi 0, %s127
      %s129 = sphi 0, %s127
      %s130 = sphi 0, %s129
      %s144 = sphi 0, %s130
      %s150 = sphi 0, %s152
      %s153 = sphi 0, %s150
      %s154 = sphi 0, %s153
      %s170 = sphi 0, %s154
    $region4: #{tpu_custom_call.1} parent=1 // loop_header_branch
      %21 = sbr.rel (%p19) target = $region8
    $region5: #{tpu_custom_call.1} parent=1 // loop_body
      %s23 = ssub.s32 %s18, 1
      %s24 = ssub.s32 %s18, 2
      %s31 = sadd.s32 1, %s26
      %p32 = scmp.ge.s32.totalorder %s31, 3
      %s33 = scalar_select %p32, 0, %s31
      %s34 = sadd.s32 1, %s25
      %s35 = scalar_select %p32, %s34, %s25
      %p36 = scmp.ge.s32.totalorder %s35, 2
      %s37 = scalar_select %p36, 0, %s35
      %s38 = ssub.s32 %s25, %s37
      %p39 = scmp.eq.s32.totalorder %s38, 0
      %s41 = sadd.s32 %s40, 1
      %s42 = scalar_select %p39, %s40, %s41
      %p45 = pneg %p39
      %p46 = scmp.eq.s32.totalorder %s18, 5
      %p47 = por %p45, %p46
      %p48 = scmp.ne.s32.totalorder %s40, %s43
      %p49 = scmp.eq.s32.totalorder %s18, 0
      %p50 = por %p48, %p49
      %p51 = scmp.ne.s32.totalorder %s40, %s43
      %p52 = scmp.eq.s32.totalorder %s23, 5
      %p53 = por %p51, %p52
      %p54 = scmp.ne.s32.totalorder %s43, %s44
      %p55 = scmp.eq.s32.totalorder %s23, 0
      %p56 = por %p54, %p55
      %p57 = scmp.ne.s32.totalorder %s43, %s44
      %p58 = scmp.eq.s32.totalorder %s24, 5
      %p59 = por %p57, %p58
      %p61 = scmp.ne.s32.totalorder %s44, %s60
      %p62 = scmp.eq.s32.totalorder %s24, 0
      %p63 = por %p61, %p62
      %s65 = sadd.s32 %s64, 1
      %p68 = scmp.eq.s32.totalorder %s18, 5
      %p69 = scmp.ne.s32.totalorder %s64, %s66
      %p70 = scmp.eq.s32.totalorder %s18, 0
      %p71 = por %p69, %p70
      %p72 = scmp.ne.s32.totalorder %s64, %s66
      %p73 = scmp.eq.s32.totalorder %s23, 5
      %p74 = por %p72, %p73
      %p75 = scmp.ne.s32.totalorder %s66, %s67
      %p76 = scmp.eq.s32.totalorder %s23, 0
      %p77 = por %p75, %p76
      %p78 = scmp.ne.s32.totalorder %s66, %s67
      %p79 = scmp.eq.s32.totalorder %s24, 5
      %p80 = por %p78, %p79
      %p82 = scmp.ne.s32.totalorder %s67, %s81
      %p83 = scmp.eq.s32.totalorder %s24, 0
      %p84 = por %p82, %p83
      %s86 = sadd.s32 %s85, 1
      %p89 = scmp.eq.s32.totalorder %s18, 5
      %p90 = scmp.ne.s32.totalorder %s85, %s87
      %p91 = scmp.eq.s32.totalorder %s18, 0
      %p92 = por %p90, %p91
      %p93 = scmp.ne.s32.totalorder %s85, %s87
      %p94 = scmp.eq.s32.totalorder %s23, 5
      %p95 = por %p93, %p94
      %p96 = scmp.ne.s32.totalorder %s87, %s88
      %p97 = scmp.eq.s32.totalorder %s23, 0
      %p98 = por %p96, %p97
      %p99 = scmp.ne.s32.totalorder %s87, %s88
      %p100 = scmp.eq.s32.totalorder %s24, 5
      %p101 = por %p99, %p100
      %p103 = scmp.ne.s32.totalorder %s88, %s102
      %p104 = scmp.eq.s32.totalorder %s24, 0
      %p105 = por %p103, %p104
      %s107 = sadd.s32 %s106, 1
      %p110 = scmp.eq.s32.totalorder %s18, 5
      %p111 = scmp.ne.s32.totalorder %s106, %s108
      %p112 = scmp.eq.s32.totalorder %s18, 0
      %p113 = por %p111, %p112
      %p114 = scmp.ne.s32.totalorder %s106, %s108
      %p115 = scmp.eq.s32.totalorder %s23, 5
      %p116 = por %p114, %p115
      %p117 = scmp.ne.s32.totalorder %s108, %s109
      %p118 = scmp.eq.s32.totalorder %s23, 0
      %p119 = por %p117, %p118
      %p120 = scmp.ne.s32.totalorder %s108, %s109
      %p121 = scmp.eq.s32.totalorder %s24, 5
      %p122 = por %p120, %p121
      %p124 = scmp.ne.s32.totalorder %s109, %s123
      %p125 = scmp.eq.s32.totalorder %s24, 0
      %p126 = por %p124, %p125
      %s128 = sadd.s32 %s127, 1
      %p131 = scmp.eq.s32.totalorder %s18, 5
      %p132 = scmp.ne.s32.totalorder %s127, %s129
      %p133 = scmp.eq.s32.totalorder %s18, 0
      %p134 = por %p132, %p133
      %p135 = scmp.ne.s32.totalorder %s127, %s129
      %p136 = scmp.eq.s32.totalorder %s23, 5
      %p137 = por %p135, %p136
      %p138 = scmp.ne.s32.totalorder %s129, %s130
      %p139 = scmp.eq.s32.totalorder %s23, 0
      %p140 = por %p138, %p139
      %p141 = scmp.ne.s32.totalorder %s129, %s130
      %p142 = scmp.eq.s32.totalorder %s24, 5
      %p143 = por %p141, %p142
      %p145 = scmp.ne.s32.totalorder %s130, %s144
      %p146 = scmp.eq.s32.totalorder %s24, 0
      %p147 = por %p145, %p146
      %s148 = ssub.s32 %s25, %s37
      %p149 = scmp.eq.s32.totalorder %s148, 0
      %s151 = sadd.s32 %s150, 1
      %s152 = scalar_select %p149, %s150, %s151
      %p155 = pneg %p149
      %p156 = scmp.eq.s32.totalorder %s18, 5
      %p157 = por %p155, %p156
      %p158 = scmp.ne.s32.totalorder %s150, %s153
      %p159 = scmp.eq.s32.totalorder %s18, 0
      %p160 = por %p158, %p159
      %p161 = scmp.ne.s32.totalorder %s150, %s153
      %p162 = scmp.eq.s32.totalorder %s23, 5
      %p163 = por %p161, %p162
      %p164 = scmp.ne.s32.totalorder %s153, %s154
      %p165 = scmp.eq.s32.totalorder %s23, 0
      %p166 = por %p164, %p165
      %p167 = scmp.ne.s32.totalorder %s153, %s154
      %p168 = scmp.eq.s32.totalorder %s24, 5
      %p169 = por %p167, %p168
      %p171 = scmp.ne.s32.totalorder %s154, %s170
      %p172 = scmp.eq.s32.totalorder %s24, 0
      %p173 = por %p171, %p172
      %p174 = scmp.le.s32.totalorder 1, %s18
      %p175 = scmp.lt.s32.totalorder %s18, 7
      %p176 = pnand %p174, %p175
      %p177 = pneg %p176
      // Predicated region
      $region9: #{tpu_custom_call.1} parent=5 // pred_check
        _
      $region10: #{tpu_custom_call.1} parent=5 // pred_check_branch
        %179 = sbr.rel (%p176) target = $region12
      $region11: #{tpu_custom_call.1} parent=5 // pred_region
        %s180 = ssub.s32 %s18, 1
        // Predicated region
        $region13: #{tpu_custom_call.1} parent=11 // pred_check
          %p181 = pneg %p77
        $region14: #{tpu_custom_call.1} parent=11 // pred_check_branch
          %183 = sbr.rel (%p181) target = $region16
        $region15: #{tpu_custom_call.1} parent=11 // pred_region
          _
        $region16: #{tpu_custom_call.1} parent=11 // pred_fallthru
          _
        // Predicated region
        $region17: #{tpu_custom_call.1} parent=11 // pred_check
          %p184 = pneg %p98
        $region18: #{tpu_custom_call.1} parent=11 // pred_check_branch
          %186 = sbr.rel (%p184) target = $region20
        $region19: #{tpu_custom_call.1} parent=11 // pred_region
          _
        $region20: #{tpu_custom_call.1} parent=11 // pred_fallthru
          _
        // Predicated region
        $region21: #{tpu_custom_call.1} parent=11 // pred_check
          %p187 = pneg %p119
        $region22: #{tpu_custom_call.1} parent=11 // pred_check_branch
          %189 = sbr.rel (%p187) target = $region24
        $region23: #{tpu_custom_call.1} parent=11 // pred_region
          %191 = vsyncadd [#allocation8], 0
          %s192 = sshll.u32 %s3, 4
          %s193 = int_to_ptr.hbm [resolvable:$true] %s192
          %s194 = sshll.u32 [#allocation7], 4
          %s195 = int_to_ptr.vmem [resolvable:$true] %s194
          %200 = dma.hbm_to_vmem [thread:$0]  %s193, 3072, %s195, [#allocation8], 64, 64, 4
        $region24: #{tpu_custom_call.1} parent=11 // pred_fallthru
          _
        // Predicated region
        $region25: #{tpu_custom_call.1} parent=11 // pred_check
          %p201 = pneg %p140
        $region26: #{tpu_custom_call.1} parent=11 // pred_check_branch
          %203 = sbr.rel (%p201) target = $region28
        $region27: #{tpu_custom_call.1} parent=11 // pred_region
          _
        $region28: #{tpu_custom_call.1} parent=11 // pred_fallthru
          _
      $region12: #{tpu_custom_call.1} parent=5 // pred_fallthru
        _
      %p204 = scmp.lt.s32.totalorder %s18, 6
      // Predicated region
      $region29: #{tpu_custom_call.1} parent=5 // pred_check
        %p205 = pneg %p204
      $region30: #{tpu_custom_call.1} parent=5 // pred_check_branch
        %207 = sbr.rel (%p205) target = $region32
      $region31: #{tpu_custom_call.1} parent=5 // pred_region
        // Predicated region
        $region33: #{tpu_custom_call.1} parent=31 // pred_check
          %p208 = pneg %p50
        $region34: #{tpu_custom_call.1} parent=31 // pred_check_branch
          %210 = sbr.rel (%p208) target = $region36
        $region35: #{tpu_custom_call.1} parent=31 // pred_region
          %s211 = sand.u32 %s40, 1
          %s212 = scalar_lea.sflag [#allocation5], %s211
          %s213 = sand.u32 %s40, 1
          %s214 = smul.addr %s213, 128
          %s215 = scalar_lea.vmem [#allocation4], %s214
          %s216 = smul.u32 16, %s25
          %218 = vsyncadd %s212, 0
          %s219 = smul.addr %s216, 8
          %s220 = scalar_lea.hbm %s0, %s219
          %s221 = sshll.u32 %s220, 4
          %s222 = int_to_ptr.hbm [resolvable:$true] %s221
          %s223 = sshll.u32 %s215, 4
          %s224 = int_to_ptr.vmem [resolvable:$true] %s223
          %229 = dma.hbm_to_vmem [thread:$0]  %s222, 2048, %s224, %s212, 128, 128, 8
        $region36: #{tpu_custom_call.1} parent=31 // pred_fallthru
          _
      $region32: #{tpu_custom_call.1} parent=5 // pred_fallthru
        _
      %p230 = scmp.le.s32.totalorder 1, %s18
      %p231 = scmp.lt.s32.totalorder %s18, 7
      %p232 = pnand %p230, %p231
      %p233 = pneg %p232
      // Predicated region
      $region37: #{tpu_custom_call.1} parent=5 // pred_check
        _
      $region38: #{tpu_custom_call.1} parent=5 // pred_check_branch
        %235 = sbr.rel (%p232) target = $region40
      $region39: #{tpu_custom_call.1} parent=5 // pred_region
        %s236 = ssub.s32 %s18, 1
        %s237 = sand.u32 %s43, 1
        %s238 = scalar_lea.sflag [#allocation5], %s237
        %s239 = sand.u32 %s43, 1
        %s240 = smul.addr %s239, 128
        %s241 = scalar_lea.vmem [#allocation4], %s240
        // Predicated region
        $region41: #{tpu_custom_call.1} parent=39 // pred_check
          %p242 = pneg %p56
        $region42: #{tpu_custom_call.1} parent=39 // pred_check_branch
          %244 = sbr.rel (%p242) target = $region44
        $region43: #{tpu_custom_call.1} parent=39 // pred_region
          %246 = dma.done %s238, 2048
        $region44: #{tpu_custom_call.1} parent=39 // pred_fallthru
          _
        // Predicated region
        $region45: #{tpu_custom_call.1} parent=39 // pred_check
          %p247 = pneg %p119
        $region46: #{tpu_custom_call.1} parent=39 // pred_check_branch
          %249 = sbr.rel (%p247) target = $region48
        $region47: #{tpu_custom_call.1} parent=39 // pred_region
          %251 = dma.done [#allocation8], 3072
        $region48: #{tpu_custom_call.1} parent=39 // pred_fallthru
          _
        %s252 = sand.u32 %s43, 1
        %s253 = scalar_lea.sflag [#allocation5], %s252
        %s254 = sand.u32 %s43, 1
        %s255 = smul.addr %s254, 128
        %s256 = scalar_lea.vmem [#allocation4], %s255
        %p257 = pneg %p56
        %p258 = pneg %p53
        %p259 = pneg %p77
        %p260 = pneg %p74
        %p261 = pneg %p98
        %p262 = pneg %p95
        %p263 = pneg %p119
        %p264 = pneg %p116
        %p265 = pneg %p140
        %p266 = pneg %p137
        %p267 = pneg %p166
        %p268 = pneg %p163
        %s269 = sand.u32 %s153, 1
        %s270 = scalar_lea.sflag [#allocation6], %s269
        %s271 = sand.u32 %s153, 1
        %s272 = smul.addr %s271, 128
        %s273 = scalar_lea.vmem [#allocation9], %s272
        %s274 = smul.u32 16, %s27
        %s275 = smul.u32 16, %s27
        %p276 = scmp.eq.s32.totalorder %s28, 0
        // Predicated region
        $region49: #{tpu_custom_call.1} parent=39 // pred_check
          %p277 = pneg %p276
        $region50: #{tpu_custom_call.1} parent=39 // pred_check_branch
          %279 = sbr.rel (%p277) target = $region52
        $region51: #{tpu_custom_call.1} parent=39 // pred_region
          %v280 = vld [vmem:[%s241] sm:$0xff]
          %v281 = vld [vmem:[%s241 + $0x8] sm:$0xff]
          %v282 = vld [vmem:[%s241 + $0x10] sm:$0xff]
          %v283 = vld [vmem:[%s241 + $0x18] sm:$0xff]
          %v284 = vld [vmem:[%s241 + $0x20] sm:$0xff]
          %v285 = vld [vmem:[%s241 + $0x28] sm:$0xff]
          %v286 = vld [vmem:[%s241 + $0x30] sm:$0xff]
          %v287 = vld [vmem:[%s241 + $0x38] sm:$0xff]
          %v288 = vld [vmem:[%s241 + $0x40] sm:$0xff]
          %v289 = vld [vmem:[%s241 + $0x48] sm:$0xff]
          %v290 = vld [vmem:[%s241 + $0x50] sm:$0xff]
          %v291 = vld [vmem:[%s241 + $0x58] sm:$0xff]
          %v292 = vld [vmem:[%s241 + $0x60] sm:$0xff]
          %v293 = vld [vmem:[%s241 + $0x68] sm:$0xff]
          %v294 = vld [vmem:[%s241 + $0x70] sm:$0xff]
          %v295 = vld [vmem:[%s241 + $0x78] sm:$0xff]
          %v296 = vld [vmem:[%s1] sm:$0xff]
          %v297 = vld [vmem:[%s1 + $0x8] sm:$0xff]
          %v298 = vld [vmem:[%s1 + $0x10] sm:$0xff]
          %v299 = vld [vmem:[%s1 + $0x18] sm:$0xff]
          %v300 = vld [vmem:[%s1 + $0x20] sm:$0xff]
          %v301 = vld [vmem:[%s1 + $0x28] sm:$0xff]
          %v302 = vld [vmem:[%s1 + $0x30] sm:$0xff]
          %v303 = vld [vmem:[%s1 + $0x38] sm:$0xff]
          %v304 = vld [vmem:[%s1 + $0x40] sm:$0xff]
          %v305 = vld [vmem:[%s1 + $0x48] sm:$0xff]
          %v306 = vld [vmem:[%s1 + $0x50] sm:$0xff]
          %v307 = vld [vmem:[%s1 + $0x58] sm:$0xff]
          %v308 = vld [vmem:[%s1 + $0x60] sm:$0xff]
          %v309 = vld [vmem:[%s1 + $0x68] sm:$0xff]
          %v310 = vld [vmem:[%s1 + $0x70] sm:$0xff]
          %v311 = vld [vmem:[%s1 + $0x78] sm:$0xff]
          %v312 = vld [vmem:[%s2] sm:$0x1]
          %v314 = vperm.slane %v312, 0
          %316 = vmatpush.msra.mxu0 %v311
          %317 = vmatpush.msra.mxu0 %v310
          %318 = vmatpush.msra.mxu0 %v309
          %319 = vmatpush.msra.mxu0 %v308
          %320 = vmatpush.msra.mxu0 %v307
          %321 = vmatpush.msra.mxu0 %v306
          %322 = vmatpush.msra.mxu0 %v305
          %323 = vmatpush.msra.mxu0 %v304
          %324 = vmatpush.msra.mxu0 %v303
          %325 = vmatpush.msra.mxu0 %v302
          %326 = vmatpush.msra.mxu0 %v301
          %327 = vmatpush.msra.mxu0 %v300
          %328 = vmatpush.msra.mxu0 %v299
          %329 = vmatpush.msra.mxu0 %v298
          %330 = vmatpush.msra.mxu0 %v297
          %331 = vmatpush.msra.mxu0 %v296
          %332 = vmatmul.f32.gmra.mxu0 %v280
          %v333 = vpop.f32.mrf.mxu0
          %v334 = vadd.f32 %v314, %v333
          %335 = vmatmul.f32.gmra.mxu0 %v281
          %v336 = vpop.f32.mrf.mxu0
          %v337 = vadd.f32 %v314, %v336
          %338 = vmatmul.f32.gmra.mxu0 %v282
          %v339 = vpop.f32.mrf.mxu0
          %v340 = vadd.f32 %v314, %v339
          %341 = vmatmul.f32.gmra.mxu0 %v283
          %v342 = vpop.f32.mrf.mxu0
          %v343 = vadd.f32 %v314, %v342
          %344 = vmatmul.f32.gmra.mxu0 %v284
          %v345 = vpop.f32.mrf.mxu0
          %v346 = vadd.f32 %v314, %v345
          %347 = vmatmul.f32.gmra.mxu0 %v285
          %v348 = vpop.f32.mrf.mxu0
          %v349 = vadd.f32 %v314, %v348
          %350 = vmatmul.f32.gmra.mxu0 %v286
          %v351 = vpop.f32.mrf.mxu0
          %v352 = vadd.f32 %v314, %v351
          %353 = vmatmul.f32.gmra.mxu0 %v287
          %v354 = vpop.f32.mrf.mxu0
          %v355 = vadd.f32 %v314, %v354
          %356 = vmatmul.f32.gmra.mxu0 %v288
          %v357 = vpop.f32.mrf.mxu0
          %v358 = vadd.f32 %v314, %v357
          %359 = vmatmul.f32.gmra.mxu0 %v289
          %v360 = vpop.f32.mrf.mxu0
          %v361 = vadd.f32 %v314, %v360
          %362 = vmatmul.f32.gmra.mxu0 %v290
          %v363 = vpop.f32.mrf.mxu0
          %v364 = vadd.f32 %v314, %v363
          %365 = vmatmul.f32.gmra.mxu0 %v291
          %v366 = vpop.f32.mrf.mxu0
          %v367 = vadd.f32 %v314, %v366
          %368 = vmatmul.f32.gmra.mxu0 %v292
          %v369 = vpop.f32.mrf.mxu0
          %v370 = vadd.f32 %v314, %v369
          %371 = vmatmul.f32.gmra.mxu0 %v293
          %v372 = vpop.f32.mrf.mxu0
          %v373 = vadd.f32 %v314, %v372
          %374 = vmatmul.f32.gmra.mxu0 %v294
          %v375 = vpop.f32.mrf.mxu0
          %v376 = vadd.f32 %v314, %v375
          %377 = vmatmul.f32.gmra.mxu0 %v295
          %v378 = vpop.f32.mrf.mxu0
          %v379 = vadd.f32 %v314, %v378
          %380 = vdwg.mxu0
          %vm381 = vcmask 31744
          %v382 = vsel %vm381, %v334, -inf
          %383 = vmax.xlane.f32.xlu0 %v382
          %v384 = vpop.xlane.xlu0 %383
          %v385 = vsel %vm381, %v337, -inf
          %386 = vmax.xlane.f32.xlu0 %v385
          %v387 = vpop.xlane.xlu0 %386
          %v388 = vsel %vm381, %v340, -inf
          %389 = vmax.xlane.f32.xlu0 %v388
          %v390 = vpop.xlane.xlu0 %389
          %v391 = vsel %vm381, %v343, -inf
          %392 = vmax.xlane.f32.xlu0 %v391
          %v393 = vpop.xlane.xlu0 %392
          %v394 = vsel %vm381, %v346, -inf
          %395 = vmax.xlane.f32.xlu0 %v394
          %v396 = vpop.xlane.xlu0 %395
          %v397 = vsel %vm381, %v349, -inf
          %398 = vmax.xlane.f32.xlu0 %v397
          %v399 = vpop.xlane.xlu0 %398
          %v400 = vsel %vm381, %v352, -inf
          %401 = vmax.xlane.f32.xlu0 %v400
          %v402 = vpop.xlane.xlu0 %401
          %v403 = vsel %vm381, %v355, -inf
          %404 = vmax.xlane.f32.xlu0 %v403
          %v405 = vpop.xlane.xlu0 %404
          %v406 = vsel %vm381, %v358, -inf
          %407 = vmax.xlane.f32.xlu0 %v406
          %v408 = vpop.xlane.xlu0 %407
          %v409 = vsel %vm381, %v361, -inf
          %410 = vmax.xlane.f32.xlu0 %v409
          %v411 = vpop.xlane.xlu0 %410
          %v412 = vsel %vm381, %v364, -inf
          %413 = vmax.xlane.f32.xlu0 %v412
          %v414 = vpop.xlane.xlu0 %413
          %v415 = vsel %vm381, %v367, -inf
          %416 = vmax.xlane.f32.xlu0 %v415
          %v417 = vpop.xlane.xlu0 %416
          %v418 = vsel %vm381, %v370, -inf
          %419 = vmax.xlane.f32.xlu0 %v418
          %v420 = vpop.xlane.xlu0 %419
          %v421 = vsel %vm381, %v373, -inf
          %422 = vmax.xlane.f32.xlu0 %v421
          %v423 = vpop.xlane.xlu0 %422
          %v424 = vsel %vm381, %v376, -inf
          %425 = vmax.xlane.f32.xlu0 %v424
          %v426 = vpop.xlane.xlu0 %425
          %v427 = vsel %vm381, %v379, -inf
          %428 = vmax.xlane.f32.xlu0 %v427
          %v429 = vpop.xlane.xlu0 %428
          %v430 = vsub.f32 %v334, %v384
          %v431 = vsub.f32 %v337, %v387
          %v432 = vsub.f32 %v340, %v390
          %v433 = vsub.f32 %v343, %v393
          %v434 = vsub.f32 %v346, %v396
          %v435 = vsub.f32 %v349, %v399
          %v436 = vsub.f32 %v352, %v402
          %v437 = vsub.f32 %v355, %v405
          %v438 = vsub.f32 %v358, %v408
          %v439 = vsub.f32 %v361, %v411
          %v440 = vsub.f32 %v364, %v414
          %v441 = vsub.f32 %v367, %v417
          %v442 = vsub.f32 %v370, %v420
          %v443 = vsub.f32 %v373, %v423
          %v444 = vsub.f32 %v376, %v426
          %v445 = vsub.f32 %v379, %v429
          %v446 = vmul.f32 %v430, 1.442695
          %v447 = vpow.pop %v446
          %v448 = vmul.f32 %v431, 1.442695
          %v449 = vpow.pop %v448
          %v450 = vmul.f32 %v432, 1.442695
          %v451 = vpow.pop %v450
          %v452 = vmul.f32 %v433, 1.442695
          %v453 = vpow.pop %v452
          %v454 = vmul.f32 %v434, 1.442695
          %v455 = vpow.pop %v454
          %v456 = vmul.f32 %v435, 1.442695
          %v457 = vpow.pop %v456
          %v458 = vmul.f32 %v436, 1.442695
          %v459 = vpow.pop %v458
          %v460 = vmul.f32 %v437, 1.442695
          %v461 = vpow.pop %v460
          %v462 = vmul.f32 %v438, 1.442695
          %v463 = vpow.pop %v462
          %v464 = vmul.f32 %v439, 1.442695
          %v465 = vpow.pop %v464
          %v466 = vmul.f32 %v440, 1.442695
          %v467 = vpow.pop %v466
          %v468 = vmul.f32 %v441, 1.442695
          %v469 = vpow.pop %v468
          %v470 = vmul.f32 %v442, 1.442695
          %v471 = vpow.pop %v470
          %v472 = vmul.f32 %v443, 1.442695
          %v473 = vpow.pop %v472
          %v474 = vmul.f32 %v444, 1.442695
          %v475 = vpow.pop %v474
          %v476 = vmul.f32 %v445, 1.442695
          %v477 = vpow.pop %v476
          %v478 = vsel %vm381, %v447, 0.0
          %479 = vadd.xlane.f32.xlu0 %v478
          %v480 = vpop.xlane.xlu0 %479
          %v481 = vsel %vm381, %v449, 0.0
          %482 = vadd.xlane.f32.xlu0 %v481
          %v483 = vpop.xlane.xlu0 %482
          %v484 = vsel %vm381, %v451, 0.0
          %485 = vadd.xlane.f32.xlu0 %v484
          %v486 = vpop.xlane.xlu0 %485
          %v487 = vsel %vm381, %v453, 0.0
          %488 = vadd.xlane.f32.xlu0 %v487
          %v489 = vpop.xlane.xlu0 %488
          %v490 = vsel %vm381, %v455, 0.0
          %491 = vadd.xlane.f32.xlu0 %v490
          %v492 = vpop.xlane.xlu0 %491
          %v493 = vsel %vm381, %v457, 0.0
          %494 = vadd.xlane.f32.xlu0 %v493
          %v495 = vpop.xlane.xlu0 %494
          %v496 = vsel %vm381, %v459, 0.0
          %497 = vadd.xlane.f32.xlu0 %v496
          %v498 = vpop.xlane.xlu0 %497
          %v499 = vsel %vm381, %v461, 0.0
          %500 = vadd.xlane.f32.xlu0 %v499
          %v501 = vpop.xlane.xlu0 %500
          %v502 = vsel %vm381, %v463, 0.0
          %503 = vadd.xlane.f32.xlu0 %v502
          %v504 = vpop.xlane.xlu0 %503
          %v505 = vsel %vm381, %v465, 0.0
          %506 = vadd.xlane.f32.xlu0 %v505
          %v507 = vpop.xlane.xlu0 %506
          %v508 = vsel %vm381, %v467, 0.0
          %509 = vadd.xlane.f32.xlu0 %v508
          %v510 = vpop.xlane.xlu0 %509
          %v511 = vsel %vm381, %v469, 0.0
          %512 = vadd.xlane.f32.xlu0 %v511
          %v513 = vpop.xlane.xlu0 %512
          %v514 = vsel %vm381, %v471, 0.0
          %515 = vadd.xlane.f32.xlu0 %v514
          %v516 = vpop.xlane.xlu0 %515
          %v517 = vsel %vm381, %v473, 0.0
          %518 = vadd.xlane.f32.xlu0 %v517
          %v519 = vpop.xlane.xlu0 %518
          %v520 = vsel %vm381, %v475, 0.0
          %521 = vadd.xlane.f32.xlu0 %v520
          %v522 = vpop.xlane.xlu0 %521
          %v523 = vsel %vm381, %v477, 0.0
          %524 = vadd.xlane.f32.xlu0 %v523
          %v525 = vpop.xlane.xlu0 %524
          %v526 = vrcp.pop %v480
          %v527 = vmul.f32 %v480, %v526
          %v528 = vsub.f32 1.0, %v527
          %v529 = vmul.f32 %v526, %v528
          %v530 = vadd.f32 %v526, %v529
          %vm531 = vweird.f32 %v480
          %vm532 = vweird.f32 %v526
          %vm533 = vmor %vm531, %vm532
          %v534 = vsel %vm533, %v526, %v530
          %v535 = vand.u32 2147483647, %v480
          %vm536 = vcmp.eq.f32.partialorder %v535, 8.507059e+37
          %v537 = vand.u32 %v480, 2147483648
          %v538 = vor.u32 1.1754944e-38, %v537
          %v539 = vsel %vm536, %v538, %v534
          %v540 = vmul.f32 %v447, %v539
          %v541 = vrcp.pop %v483
          %v542 = vmul.f32 %v483, %v541
          %v543 = vsub.f32 1.0, %v542
          %v544 = vmul.f32 %v541, %v543
          %v545 = vadd.f32 %v541, %v544
          %vm546 = vweird.f32 %v483
          %vm547 = vweird.f32 %v541
          %vm548 = vmor %vm546, %vm547
          %v549 = vsel %vm548, %v541, %v545
          %v550 = vand.u32 2147483647, %v483
          %vm551 = vcmp.eq.f32.partialorder %v550, 8.507059e+37
          %v552 = vand.u32 %v483, 2147483648
          %v553 = vor.u32 1.1754944e-38, %v552
          %v554 = vsel %vm551, %v553, %v549
          %v555 = vmul.f32 %v449, %v554
          %v556 = vrcp.pop %v486
          %v557 = vmul.f32 %v486, %v556
          %v558 = vsub.f32 1.0, %v557
          %v559 = vmul.f32 %v556, %v558
          %v560 = vadd.f32 %v556, %v559
          %vm561 = vweird.f32 %v486
          %vm562 = vweird.f32 %v556
          %vm563 = vmor %vm561, %vm562
          %v564 = vsel %vm563, %v556, %v560
          %v565 = vand.u32 2147483647, %v486
          %vm566 = vcmp.eq.f32.partialorder %v565, 8.507059e+37
          %v567 = vand.u32 %v486, 2147483648
          %v568 = vor.u32 1.1754944e-38, %v567
          %v569 = vsel %vm566, %v568, %v564
          %v570 = vmul.f32 %v451, %v569
          %v571 = vrcp.pop %v489
          %v572 = vmul.f32 %v489, %v571
          %v573 = vsub.f32 1.0, %v572
          %v574 = vmul.f32 %v571, %v573
          %v575 = vadd.f32 %v571, %v574
          %vm576 = vweird.f32 %v489
          %vm577 = vweird.f32 %v571
          %vm578 = vmor %vm576, %vm577
          %v579 = vsel %vm578, %v571, %v575
          %v580 = vand.u32 2147483647, %v489
          %vm581 = vcmp.eq.f32.partialorder %v580, 8.507059e+37
          %v582 = vand.u32 %v489, 2147483648
          %v583 = vor.u32 1.1754944e-38, %v582
          %v584 = vsel %vm581, %v583, %v579
          %v585 = vmul.f32 %v453, %v584
          %v586 = vrcp.pop %v492
          %v587 = vmul.f32 %v492, %v586
          %v588 = vsub.f32 1.0, %v587
          %v589 = vmul.f32 %v586, %v588
          %v590 = vadd.f32 %v586, %v589
          %vm591 = vweird.f32 %v492
          %vm592 = vweird.f32 %v586
          %vm593 = vmor %vm591, %vm592
          %v594 = vsel %vm593, %v586, %v590
          %v595 = vand.u32 2147483647, %v492
          %vm596 = vcmp.eq.f32.partialorder %v595, 8.507059e+37
          %v597 = vand.u32 %v492, 2147483648
          %v598 = vor.u32 1.1754944e-38, %v597
          %v599 = vsel %vm596, %v598, %v594
          %v600 = vmul.f32 %v455, %v599
          %v601 = vrcp.pop %v495
          %v602 = vmul.f32 %v495, %v601
          %v603 = vsub.f32 1.0, %v602
          %v604 = vmul.f32 %v601, %v603
          %v605 = vadd.f32 %v601, %v604
          %vm606 = vweird.f32 %v495
          %vm607 = vweird.f32 %v601
          %vm608 = vmor %vm606, %vm607
          %v609 = vsel %vm608, %v601, %v605
          %v610 = vand.u32 2147483647, %v495
          %vm611 = vcmp.eq.f32.partialorder %v610, 8.507059e+37
          %v612 = vand.u32 %v495, 2147483648
          %v613 = vor.u32 1.1754944e-38, %v612
          %v614 = vsel %vm611, %v613, %v609
          %v615 = vmul.f32 %v457, %v614
          %v616 = vrcp.pop %v498
          %v617 = vmul.f32 %v498, %v616
          %v618 = vsub.f32 1.0, %v617
          %v619 = vmul.f32 %v616, %v618
          %v620 = vadd.f32 %v616, %v619
          %vm621 = vweird.f32 %v498
          %vm622 = vweird.f32 %v616
          %vm623 = vmor %vm621, %vm622
          %v624 = vsel %vm623, %v616, %v620
          %v625 = vand.u32 2147483647, %v498
          %vm626 = vcmp.eq.f32.partialorder %v625, 8.507059e+37
          %v627 = vand.u32 %v498, 2147483648
          %v628 = vor.u32 1.1754944e-38, %v627
          %v629 = vsel %vm626, %v628, %v624
          %v630 = vmul.f32 %v459, %v629
          %v631 = vrcp.pop %v501
          %v632 = vmul.f32 %v501, %v631
          %v633 = vsub.f32 1.0, %v632
          %v634 = vmul.f32 %v631, %v633
          %v635 = vadd.f32 %v631, %v634
          %vm636 = vweird.f32 %v501
          %vm637 = vweird.f32 %v631
          %vm638 = vmor %vm636, %vm637
          %v639 = vsel %vm638, %v631, %v635
          %v640 = vand.u32 2147483647, %v501
          %vm641 = vcmp.eq.f32.partialorder %v640, 8.507059e+37
          %v642 = vand.u32 %v501, 2147483648
          %v643 = vor.u32 1.1754944e-38, %v642
          %v644 = vsel %vm641, %v643, %v639
          %v645 = vmul.f32 %v461, %v644
          %v646 = vrcp.pop %v504
          %v647 = vmul.f32 %v504, %v646
          %v648 = vsub.f32 1.0, %v647
          %v649 = vmul.f32 %v646, %v648
          %v650 = vadd.f32 %v646, %v649
          %vm651 = vweird.f32 %v504
          %vm652 = vweird.f32 %v646
          %vm653 = vmor %vm651, %vm652
          %v654 = vsel %vm653, %v646, %v650
          %v655 = vand.u32 2147483647, %v504
          %vm656 = vcmp.eq.f32.partialorder %v655, 8.507059e+37
          %v657 = vand.u32 %v504, 2147483648
          %v658 = vor.u32 1.1754944e-38, %v657
          %v659 = vsel %vm656, %v658, %v654
          %v660 = vmul.f32 %v463, %v659
          %v661 = vrcp.pop %v507
          %v662 = vmul.f32 %v507, %v661
          %v663 = vsub.f32 1.0, %v662
          %v664 = vmul.f32 %v661, %v663
          %v665 = vadd.f32 %v661, %v664
          %vm666 = vweird.f32 %v507
          %vm667 = vweird.f32 %v661
          %vm668 = vmor %vm666, %vm667
          %v669 = vsel %vm668, %v661, %v665
          %v670 = vand.u32 2147483647, %v507
          %vm671 = vcmp.eq.f32.partialorder %v670, 8.507059e+37
          %v672 = vand.u32 %v507, 2147483648
          %v673 = vor.u32 1.1754944e-38, %v672
          %v674 = vsel %vm671, %v673, %v669
          %v675 = vmul.f32 %v465, %v674
          %v676 = vrcp.pop %v510
          %v677 = vmul.f32 %v510, %v676
          %v678 = vsub.f32 1.0, %v677
          %v679 = vmul.f32 %v676, %v678
          %v680 = vadd.f32 %v676, %v679
          %vm681 = vweird.f32 %v510
          %vm682 = vweird.f32 %v676
          %vm683 = vmor %vm681, %vm682
          %v684 = vsel %vm683, %v676, %v680
          %v685 = vand.u32 2147483647, %v510
          %vm686 = vcmp.eq.f32.partialorder %v685, 8.507059e+37
          %v687 = vand.u32 %v510, 2147483648
          %v688 = vor.u32 1.1754944e-38, %v687
          %v689 = vsel %vm686, %v688, %v684
          %v690 = vmul.f32 %v467, %v689
          %v691 = vrcp.pop %v513
          %v692 = vmul.f32 %v513, %v691
          %v693 = vsub.f32 1.0, %v692
          %v694 = vmul.f32 %v691, %v693
          %v695 = vadd.f32 %v691, %v694
          %vm696 = vweird.f32 %v513
          %vm697 = vweird.f32 %v691
          %vm698 = vmor %vm696, %vm697
          %v699 = vsel %vm698, %v691, %v695
          %v700 = vand.u32 2147483647, %v513
          %vm701 = vcmp.eq.f32.partialorder %v700, 8.507059e+37
          %v702 = vand.u32 %v513, 2147483648
          %v703 = vor.u32 1.1754944e-38, %v702
          %v704 = vsel %vm701, %v703, %v699
          %v705 = vmul.f32 %v469, %v704
          %v706 = vrcp.pop %v516
          %v707 = vmul.f32 %v516, %v706
          %v708 = vsub.f32 1.0, %v707
          %v709 = vmul.f32 %v706, %v708
          %v710 = vadd.f32 %v706, %v709
          %vm711 = vweird.f32 %v516
          %vm712 = vweird.f32 %v706
          %vm713 = vmor %vm711, %vm712
          %v714 = vsel %vm713, %v706, %v710
          %v715 = vand.u32 2147483647, %v516
          %vm716 = vcmp.eq.f32.partialorder %v715, 8.507059e+37
          %v717 = vand.u32 %v516, 2147483648
          %v718 = vor.u32 1.1754944e-38, %v717
          %v719 = vsel %vm716, %v718, %v714
          %v720 = vmul.f32 %v471, %v719
          %v721 = vrcp.pop %v519
          %v722 = vmul.f32 %v519, %v721
          %v723 = vsub.f32 1.0, %v722
          %v724 = vmul.f32 %v721, %v723
          %v725 = vadd.f32 %v721, %v724
          %vm726 = vweird.f32 %v519
          %vm727 = vweird.f32 %v721
          %vm728 = vmor %vm726, %vm727
          %v729 = vsel %vm728, %v721, %v725
          %v730 = vand.u32 2147483647, %v519
          %vm731 = vcmp.eq.f32.partialorder %v730, 8.507059e+37
          %v732 = vand.u32 %v519, 2147483648
          %v733 = vor.u32 1.1754944e-38, %v732
          %v734 = vsel %vm731, %v733, %v729
          %v735 = vmul.f32 %v473, %v734
          %v736 = vrcp.pop %v522
          %v737 = vmul.f32 %v522, %v736
          %v738 = vsub.f32 1.0, %v737
          %v739 = vmul.f32 %v736, %v738
          %v740 = vadd.f32 %v736, %v739
          %vm741 = vweird.f32 %v522
          %vm742 = vweird.f32 %v736
          %vm743 = vmor %vm741, %vm742
          %v744 = vsel %vm743, %v736, %v740
          %v745 = vand.u32 2147483647, %v522
          %vm746 = vcmp.eq.f32.partialorder %v745, 8.507059e+37
          %v747 = vand.u32 %v522, 2147483648
          %v748 = vor.u32 1.1754944e-38, %v747
          %v749 = vsel %vm746, %v748, %v744
          %v750 = vmul.f32 %v475, %v749
          %v751 = vrcp.pop %v525
          %v752 = vmul.f32 %v525, %v751
          %v753 = vsub.f32 1.0, %v752
          %v754 = vmul.f32 %v751, %v753
          %v755 = vadd.f32 %v751, %v754
          %vm756 = vweird.f32 %v525
          %vm757 = vweird.f32 %v751
          %vm758 = vmor %vm756, %vm757
          %v759 = vsel %vm758, %v751, %v755
          %v760 = vand.u32 2147483647, %v525
          %vm761 = vcmp.eq.f32.partialorder %v760, 8.507059e+37
          %v762 = vand.u32 %v525, 2147483648
          %v763 = vor.u32 1.1754944e-38, %v762
          %v764 = vsel %vm761, %v763, %v759
          %v765 = vmul.f32 %v477, %v764
          %v766 = vlaneseq
          %v767 = vand.u32 %v766, 127
          %v768 = vsel %vm381, %v540, -inf
          %769 = vmax.xlane.f32.xlu0 %v768
          %v770 = vpop.xlane.xlu0 %769
          %v771 = vsel %vm381, %v555, -inf
          %772 = vmax.xlane.f32.xlu0 %v771
          %v773 = vpop.xlane.xlu0 %772
          %v774 = vsel %vm381, %v570, -inf
          %775 = vmax.xlane.f32.xlu0 %v774
          %v776 = vpop.xlane.xlu0 %775
          %v777 = vsel %vm381, %v585, -inf
          %778 = vmax.xlane.f32.xlu0 %v777
          %v779 = vpop.xlane.xlu0 %778
          %v780 = vsel %vm381, %v600, -inf
          %781 = vmax.xlane.f32.xlu0 %v780
          %v782 = vpop.xlane.xlu0 %781
          %v783 = vsel %vm381, %v615, -inf
          %784 = vmax.xlane.f32.xlu0 %v783
          %v785 = vpop.xlane.xlu0 %784
          %v786 = vsel %vm381, %v630, -inf
          %787 = vmax.xlane.f32.xlu0 %v786
          %v788 = vpop.xlane.xlu0 %787
          %v789 = vsel %vm381, %v645, -inf
          %790 = vmax.xlane.f32.xlu0 %v789
          %v791 = vpop.xlane.xlu0 %790
          %v792 = vsel %vm381, %v660, -inf
          %793 = vmax.xlane.f32.xlu0 %v792
          %v794 = vpop.xlane.xlu0 %793
          %v795 = vsel %vm381, %v675, -inf
          %796 = vmax.xlane.f32.xlu0 %v795
          %v797 = vpop.xlane.xlu0 %796
          %v798 = vsel %vm381, %v690, -inf
          %799 = vmax.xlane.f32.xlu0 %v798
          %v800 = vpop.xlane.xlu0 %799
          %v801 = vsel %vm381, %v705, -inf
          %802 = vmax.xlane.f32.xlu0 %v801
          %v803 = vpop.xlane.xlu0 %802
          %v804 = vsel %vm381, %v720, -inf
          %805 = vmax.xlane.f32.xlu0 %v804
          %v806 = vpop.xlane.xlu0 %805
          %v807 = vsel %vm381, %v735, -inf
          %808 = vmax.xlane.f32.xlu0 %v807
          %v809 = vpop.xlane.xlu0 %808
          %v810 = vsel %vm381, %v750, -inf
          %811 = vmax.xlane.f32.xlu0 %v810
          %v812 = vpop.xlane.xlu0 %811
          %v813 = vsel %vm381, %v765, -inf
          %814 = vmax.xlane.f32.xlu0 %v813
          %v815 = vpop.xlane.xlu0 %814
          %vm816 = vcmp.eq.f32.partialorder %v540, %v770
          %vm817 = vcmp.eq.f32.partialorder %v555, %v773
          %vm818 = vcmp.eq.f32.partialorder %v570, %v776
          %vm819 = vcmp.eq.f32.partialorder %v585, %v779
          %vm820 = vcmp.eq.f32.partialorder %v600, %v782
          %vm821 = vcmp.eq.f32.partialorder %v615, %v785
          %vm822 = vcmp.eq.f32.partialorder %v630, %v788
          %vm823 = vcmp.eq.f32.partialorder %v645, %v791
          %vm824 = vcmp.eq.f32.partialorder %v660, %v794
          %vm825 = vcmp.eq.f32.partialorder %v675, %v797
          %vm826 = vcmp.eq.f32.partialorder %v690, %v800
          %vm827 = vcmp.eq.f32.partialorder %v705, %v803
          %vm828 = vcmp.eq.f32.partialorder %v720, %v806
          %vm829 = vcmp.eq.f32.partialorder %v735, %v809
          %vm830 = vcmp.eq.f32.partialorder %v750, %v812
          %vm831 = vcmp.eq.f32.partialorder %v765, %v815
          %v832 = vsel %vm816, %v767, 4
          %v833 = vsel %vm817, %v767, 4
          %v834 = vsel %vm818, %v767, 4
          %v835 = vsel %vm819, %v767, 4
          %v836 = vsel %vm820, %v767, 4
          %v837 = vsel %vm821, %v767, 4
          %v838 = vsel %vm822, %v767, 4
          %v839 = vsel %vm823, %v767, 4
          %v840 = vsel %vm824, %v767, 4
          %v841 = vsel %vm825, %v767, 4
          %v842 = vsel %vm826, %v767, 4
          %v843 = vsel %vm827, %v767, 4
          %v844 = vsel %vm828, %v767, 4
          %v845 = vsel %vm829, %v767, 4
          %v846 = vsel %vm830, %v767, 4
          %v847 = vsel %vm831, %v767, 4
          %v848 = vsel %vm381, %v832, 2147483647
          %v849 = vand.u32 %v848, 65535
          %v850 = vshra.s32 %v848, 16
          %v851 = vcvt.s32.f32 %v849
          %v852 = vcvt.s32.f32 %v850
          %853 = vmin.xlane.f32.xlu0 %v852
          %v854 = vpop.xlane.xlu0 %853
          %vm855 = vcmp.eq.f32.partialorder %v852, %v854
          %v856 = vsel %vm855, %v851, inf
          %857 = vmin.xlane.f32.xlu0 %v856
          %v858 = vpop.xlane.xlu0 %857
          %v859 = vcvt.f32.s32 %v858
          %v860 = vcvt.f32.s32 %v854
          %v861 = vshll.u32 %v860, 16
          %v862 = vadd.s32 %v861, %v859
          %v863 = vsel %vm381, %v833, 2147483647
          %v864 = vand.u32 %v863, 65535
          %v865 = vshra.s32 %v863, 16
          %v866 = vcvt.s32.f32 %v864
          %v867 = vcvt.s32.f32 %v865
          %868 = vmin.xlane.f32.xlu0 %v867
          %v869 = vpop.xlane.xlu0 %868
          %vm870 = vcmp.eq.f32.partialorder %v867, %v869
          %v871 = vsel %vm870, %v866, inf
          %872 = vmin.xlane.f32.xlu0 %v871
          %v873 = vpop.xlane.xlu0 %872
          %v874 = vcvt.f32.s32 %v873
          %v875 = vcvt.f32.s32 %v869
          %v876 = vshll.u32 %v875, 16
          %v877 = vadd.s32 %v876, %v874
          %v878 = vsel %vm381, %v834, 2147483647
          %v879 = vand.u32 %v878, 65535
          %v880 = vshra.s32 %v878, 16
          %v881 = vcvt.s32.f32 %v879
          %v882 = vcvt.s32.f32 %v880
          %883 = vmin.xlane.f32.xlu0 %v882
          %v884 = vpop.xlane.xlu0 %883
          %vm885 = vcmp.eq.f32.partialorder %v882, %v884
          %v886 = vsel %vm885, %v881, inf
          %887 = vmin.xlane.f32.xlu0 %v886
          %v888 = vpop.xlane.xlu0 %887
          %v889 = vcvt.f32.s32 %v888
          %v890 = vcvt.f32.s32 %v884
          %v891 = vshll.u32 %v890, 16
          %v892 = vadd.s32 %v891, %v889
          %v893 = vsel %vm381, %v835, 2147483647
          %v894 = vand.u32 %v893, 65535
          %v895 = vshra.s32 %v893, 16
          %v896 = vcvt.s32.f32 %v894
          %v897 = vcvt.s32.f32 %v895
          %898 = vmin.xlane.f32.xlu0 %v897
          %v899 = vpop.xlane.xlu0 %898
          %vm900 = vcmp.eq.f32.partialorder %v897, %v899
          %v901 = vsel %vm900, %v896, inf
          %902 = vmin.xlane.f32.xlu0 %v901
          %v903 = vpop.xlane.xlu0 %902
          %v904 = vcvt.f32.s32 %v903
          %v905 = vcvt.f32.s32 %v899
          %v906 = vshll.u32 %v905, 16
          %v907 = vadd.s32 %v906, %v904
          %v908 = vsel %vm381, %v836, 2147483647
          %v909 = vand.u32 %v908, 65535
          %v910 = vshra.s32 %v908, 16
          %v911 = vcvt.s32.f32 %v909
          %v912 = vcvt.s32.f32 %v910
          %913 = vmin.xlane.f32.xlu0 %v912
          %v914 = vpop.xlane.xlu0 %913
          %vm915 = vcmp.eq.f32.partialorder %v912, %v914
          %v916 = vsel %vm915, %v911, inf
          %917 = vmin.xlane.f32.xlu0 %v916
          %v918 = vpop.xlane.xlu0 %917
          %v919 = vcvt.f32.s32 %v918
          %v920 = vcvt.f32.s32 %v914
          %v921 = vshll.u32 %v920, 16
          %v922 = vadd.s32 %v921, %v919
          %v923 = vsel %vm381, %v837, 2147483647
          %v924 = vand.u32 %v923, 65535
          %v925 = vshra.s32 %v923, 16
          %v926 = vcvt.s32.f32 %v924
          %v927 = vcvt.s32.f32 %v925
          %928 = vmin.xlane.f32.xlu0 %v927
          %v929 = vpop.xlane.xlu0 %928
          %vm930 = vcmp.eq.f32.partialorder %v927, %v929
          %v931 = vsel %vm930, %v926, inf
          %932 = vmin.xlane.f32.xlu0 %v931
          %v933 = vpop.xlane.xlu0 %932
          %v934 = vcvt.f32.s32 %v933
          %v935 = vcvt.f32.s32 %v929
          %v936 = vshll.u32 %v935, 16
          %v937 = vadd.s32 %v936, %v934
          %v938 = vsel %vm381, %v838, 2147483647
          %v939 = vand.u32 %v938, 65535
          %v940 = vshra.s32 %v938, 16
          %v941 = vcvt.s32.f32 %v939
          %v942 = vcvt.s32.f32 %v940
          %943 = vmin.xlane.f32.xlu0 %v942
          %v944 = vpop.xlane.xlu0 %943
          %vm945 = vcmp.eq.f32.partialorder %v942, %v944
          %v946 = vsel %vm945, %v941, inf
          %947 = vmin.xlane.f32.xlu0 %v946
          %v948 = vpop.xlane.xlu0 %947
          %v949 = vcvt.f32.s32 %v948
          %v950 = vcvt.f32.s32 %v944
          %v951 = vshll.u32 %v950, 16
          %v952 = vadd.s32 %v951, %v949
          %v953 = vsel %vm381, %v839, 2147483647
          %v954 = vand.u32 %v953, 65535
          %v955 = vshra.s32 %v953, 16
          %v956 = vcvt.s32.f32 %v954
          %v957 = vcvt.s32.f32 %v955
          %958 = vmin.xlane.f32.xlu0 %v957
          %v959 = vpop.xlane.xlu0 %958
          %vm960 = vcmp.eq.f32.partialorder %v957, %v959
          %v961 = vsel %vm960, %v956, inf
          %962 = vmin.xlane.f32.xlu0 %v961
          %v963 = vpop.xlane.xlu0 %962
          %v964 = vcvt.f32.s32 %v963
          %v965 = vcvt.f32.s32 %v959
          %v966 = vshll.u32 %v965, 16
          %v967 = vadd.s32 %v966, %v964
          %v968 = vsel %vm381, %v840, 2147483647
          %v969 = vand.u32 %v968, 65535
          %v970 = vshra.s32 %v968, 16
          %v971 = vcvt.s32.f32 %v969
          %v972 = vcvt.s32.f32 %v970
          %973 = vmin.xlane.f32.xlu0 %v972
          %v974 = vpop.xlane.xlu0 %973
          %vm975 = vcmp.eq.f32.partialorder %v972, %v974
          %v976 = vsel %vm975, %v971, inf
          %977 = vmin.xlane.f32.xlu0 %v976
          %v978 = vpop.xlane.xlu0 %977
          %v979 = vcvt.f32.s32 %v978
          %v980 = vcvt.f32.s32 %v974
          %v981 = vshll.u32 %v980, 16
          %v982 = vadd.s32 %v981, %v979
          %v983 = vsel %vm381, %v841, 2147483647
          %v984 = vand.u32 %v983, 65535
          %v985 = vshra.s32 %v983, 16
          %v986 = vcvt.s32.f32 %v984
          %v987 = vcvt.s32.f32 %v985
          %988 = vmin.xlane.f32.xlu0 %v987
          %v989 = vpop.xlane.xlu0 %988
          %vm990 = vcmp.eq.f32.partialorder %v987, %v989
          %v991 = vsel %vm990, %v986, inf
          %992 = vmin.xlane.f32.xlu0 %v991
          %v993 = vpop.xlane.xlu0 %992
          %v994 = vcvt.f32.s32 %v993
          %v995 = vcvt.f32.s32 %v989
          %v996 = vshll.u32 %v995, 16
          %v997 = vadd.s32 %v996, %v994
          %v998 = vsel %vm381, %v842, 2147483647
          %v999 = vand.u32 %v998, 65535
          %v1000 = vshra.s32 %v998, 16
          %v1001 = vcvt.s32.f32 %v999
          %v1002 = vcvt.s32.f32 %v1000
          %1003 = vmin.xlane.f32.xlu0 %v1002
          %v1004 = vpop.xlane.xlu0 %1003
          %vm1005 = vcmp.eq.f32.partialorder %v1002, %v1004
          %v1006 = vsel %vm1005, %v1001, inf
          %1007 = vmin.xlane.f32.xlu0 %v1006
          %v1008 = vpop.xlane.xlu0 %1007
          %v1009 = vcvt.f32.s32 %v1008
          %v1010 = vcvt.f32.s32 %v1004
          %v1011 = vshll.u32 %v1010, 16
          %v1012 = vadd.s32 %v1011, %v1009
          %v1013 = vsel %vm381, %v843, 2147483647
          %v1014 = vand.u32 %v1013, 65535
          %v1015 = vshra.s32 %v1013, 16
          %v1016 = vcvt.s32.f32 %v1014
          %v1017 = vcvt.s32.f32 %v1015
          %1018 = vmin.xlane.f32.xlu0 %v1017
          %v1019 = vpop.xlane.xlu0 %1018
          %vm1020 = vcmp.eq.f32.partialorder %v1017, %v1019
          %v1021 = vsel %vm1020, %v1016, inf
          %1022 = vmin.xlane.f32.xlu0 %v1021
          %v1023 = vpop.xlane.xlu0 %1022
          %v1024 = vcvt.f32.s32 %v1023
          %v1025 = vcvt.f32.s32 %v1019
          %v1026 = vshll.u32 %v1025, 16
          %v1027 = vadd.s32 %v1026, %v1024
          %v1028 = vsel %vm381, %v844, 2147483647
          %v1029 = vand.u32 %v1028, 65535
          %v1030 = vshra.s32 %v1028, 16
          %v1031 = vcvt.s32.f32 %v1029
          %v1032 = vcvt.s32.f32 %v1030
          %1033 = vmin.xlane.f32.xlu0 %v1032
          %v1034 = vpop.xlane.xlu0 %1033
          %vm1035 = vcmp.eq.f32.partialorder %v1032, %v1034
          %v1036 = vsel %vm1035, %v1031, inf
          %1037 = vmin.xlane.f32.xlu0 %v1036
          %v1038 = vpop.xlane.xlu0 %1037
          %v1039 = vcvt.f32.s32 %v1038
          %v1040 = vcvt.f32.s32 %v1034
          %v1041 = vshll.u32 %v1040, 16
          %v1042 = vadd.s32 %v1041, %v1039
          %v1043 = vsel %vm381, %v845, 2147483647
          %v1044 = vand.u32 %v1043, 65535
          %v1045 = vshra.s32 %v1043, 16
          %v1046 = vcvt.s32.f32 %v1044
          %v1047 = vcvt.s32.f32 %v1045
          %1048 = vmin.xlane.f32.xlu0 %v1047
          %v1049 = vpop.xlane.xlu0 %1048
          %vm1050 = vcmp.eq.f32.partialorder %v1047, %v1049
          %v1051 = vsel %vm1050, %v1046, inf
          %1052 = vmin.xlane.f32.xlu0 %v1051
          %v1053 = vpop.xlane.xlu0 %1052
          %v1054 = vcvt.f32.s32 %v1053
          %v1055 = vcvt.f32.s32 %v1049
          %v1056 = vshll.u32 %v1055, 16
          %v1057 = vadd.s32 %v1056, %v1054
          %v1058 = vsel %vm381, %v846, 2147483647
          %v1059 = vand.u32 %v1058, 65535
          %v1060 = vshra.s32 %v1058, 16
          %v1061 = vcvt.s32.f32 %v1059
          %v1062 = vcvt.s32.f32 %v1060
          %1063 = vmin.xlane.f32.xlu0 %v1062
          %v1064 = vpop.xlane.xlu0 %1063
          %vm1065 = vcmp.eq.f32.partialorder %v1062, %v1064
          %v1066 = vsel %vm1065, %v1061, inf
          %1067 = vmin.xlane.f32.xlu0 %v1066
          %v1068 = vpop.xlane.xlu0 %1067
          %v1069 = vcvt.f32.s32 %v1068
          %v1070 = vcvt.f32.s32 %v1064
          %v1071 = vshll.u32 %v1070, 16
          %v1072 = vadd.s32 %v1071, %v1069
          %v1073 = vsel %vm381, %v847, 2147483647
          %v1074 = vand.u32 %v1073, 65535
          %v1075 = vshra.s32 %v1073, 16
          %v1076 = vcvt.s32.f32 %v1074
          %v1077 = vcvt.s32.f32 %v1075
          %1078 = vmin.xlane.f32.xlu0 %v1077
          %v1079 = vpop.xlane.xlu0 %1078
          %vm1080 = vcmp.eq.f32.partialorder %v1077, %v1079
          %v1081 = vsel %vm1080, %v1076, inf
          %1082 = vmin.xlane.f32.xlu0 %v1081
          %v1083 = vpop.xlane.xlu0 %1082
          %v1084 = vcvt.f32.s32 %v1083
          %v1085 = vcvt.f32.s32 %v1079
          %v1086 = vshll.u32 %v1085, 16
          %v1087 = vadd.s32 %v1086, %v1084
          %vm1088 = vcmp.eq.s32.totalorder %v767, %v862
          %vm1089 = vcmp.eq.s32.totalorder %v767, %v877
          %vm1090 = vcmp.eq.s32.totalorder %v767, %v892
          %vm1091 = vcmp.eq.s32.totalorder %v767, %v907
          %vm1092 = vcmp.eq.s32.totalorder %v767, %v922
          %vm1093 = vcmp.eq.s32.totalorder %v767, %v937
          %vm1094 = vcmp.eq.s32.totalorder %v767, %v952
          %vm1095 = vcmp.eq.s32.totalorder %v767, %v967
          %vm1096 = vcmp.eq.s32.totalorder %v767, %v982
          %vm1097 = vcmp.eq.s32.totalorder %v767, %v997
          %vm1098 = vcmp.eq.s32.totalorder %v767, %v1012
          %vm1099 = vcmp.eq.s32.totalorder %v767, %v1027
          %vm1100 = vcmp.eq.s32.totalorder %v767, %v1042
          %vm1101 = vcmp.eq.s32.totalorder %v767, %v1057
          %vm1102 = vcmp.eq.s32.totalorder %v767, %v1072
          %vm1103 = vcmp.eq.s32.totalorder %v767, %v1087
          %v1104 = vsel %vm1088, %v540, 0.0
          %v1105 = vsel %vm1089, %v555, 0.0
          %v1106 = vsel %vm1090, %v570, 0.0
          %v1107 = vsel %vm1091, %v585, 0.0
          %v1108 = vsel %vm1092, %v600, 0.0
          %v1109 = vsel %vm1093, %v615, 0.0
          %v1110 = vsel %vm1094, %v630, 0.0
          %v1111 = vsel %vm1095, %v645, 0.0
          %v1112 = vsel %vm1096, %v660, 0.0
          %v1113 = vsel %vm1097, %v675, 0.0
          %v1114 = vsel %vm1098, %v690, 0.0
          %v1115 = vsel %vm1099, %v705, 0.0
          %v1116 = vsel %vm1100, %v720, 0.0
          %v1117 = vsel %vm1101, %v735, 0.0
          %v1118 = vsel %vm1102, %v750, 0.0
          %v1119 = vsel %vm1103, %v765, 0.0
          %v1120 = vsel %vm1088, -inf, %v540
          %v1121 = vsel %vm1089, -inf, %v555
          %v1122 = vsel %vm1090, -inf, %v570
          %v1123 = vsel %vm1091, -inf, %v585
          %v1124 = vsel %vm1092, -inf, %v600
          %v1125 = vsel %vm1093, -inf, %v615
          %v1126 = vsel %vm1094, -inf, %v630
          %v1127 = vsel %vm1095, -inf, %v645
          %v1128 = vsel %vm1096, -inf, %v660
          %v1129 = vsel %vm1097, -inf, %v675
          %v1130 = vsel %vm1098, -inf, %v690
          %v1131 = vsel %vm1099, -inf, %v705
          %v1132 = vsel %vm1100, -inf, %v720
          %v1133 = vsel %vm1101, -inf, %v735
          %v1134 = vsel %vm1102, -inf, %v750
          %v1135 = vsel %vm1103, -inf, %v765
          %v1136 = vsel %vm381, %v1120, -inf
          %1137 = vmax.xlane.f32.xlu0 %v1136
          %v1138 = vpop.xlane.xlu0 %1137
          %v1139 = vsel %vm381, %v1121, -inf
          %1140 = vmax.xlane.f32.xlu0 %v1139
          %v1141 = vpop.xlane.xlu0 %1140
          %v1142 = vsel %vm381, %v1122, -inf
          %1143 = vmax.xlane.f32.xlu0 %v1142
          %v1144 = vpop.xlane.xlu0 %1143
          %v1145 = vsel %vm381, %v1123, -inf
          %1146 = vmax.xlane.f32.xlu0 %v1145
          %v1147 = vpop.xlane.xlu0 %1146
          %v1148 = vsel %vm381, %v1124, -inf
          %1149 = vmax.xlane.f32.xlu0 %v1148
          %v1150 = vpop.xlane.xlu0 %1149
          %v1151 = vsel %vm381, %v1125, -inf
          %1152 = vmax.xlane.f32.xlu0 %v1151
          %v1153 = vpop.xlane.xlu0 %1152
          %v1154 = vsel %vm381, %v1126, -inf
          %1155 = vmax.xlane.f32.xlu0 %v1154
          %v1156 = vpop.xlane.xlu0 %1155
          %v1157 = vsel %vm381, %v1127, -inf
          %1158 = vmax.xlane.f32.xlu0 %v1157
          %v1159 = vpop.xlane.xlu0 %1158
          %v1160 = vsel %vm381, %v1128, -inf
          %1161 = vmax.xlane.f32.xlu0 %v1160
          %v1162 = vpop.xlane.xlu0 %1161
          %v1163 = vsel %vm381, %v1129, -inf
          %1164 = vmax.xlane.f32.xlu0 %v1163
          %v1165 = vpop.xlane.xlu0 %1164
          %v1166 = vsel %vm381, %v1130, -inf
          %1167 = vmax.xlane.f32.xlu0 %v1166
          %v1168 = vpop.xlane.xlu0 %1167
          %v1169 = vsel %vm381, %v1131, -inf
          %1170 = vmax.xlane.f32.xlu0 %v1169
          %v1171 = vpop.xlane.xlu0 %1170
          %v1172 = vsel %vm381, %v1132, -inf
          %1173 = vmax.xlane.f32.xlu0 %v1172
          %v1174 = vpop.xlane.xlu0 %1173
          %v1175 = vsel %vm381, %v1133, -inf
          %1176 = vmax.xlane.f32.xlu0 %v1175
          %v1177 = vpop.xlane.xlu0 %1176
          %v1178 = vsel %vm381, %v1134, -inf
          %1179 = vmax.xlane.f32.xlu0 %v1178
          %v1180 = vpop.xlane.xlu0 %1179
          %v1181 = vsel %vm381, %v1135, -inf
          %1182 = vmax.xlane.f32.xlu0 %v1181
          %v1183 = vpop.xlane.xlu0 %1182
          %vm1184 = vcmp.eq.f32.partialorder %v1120, %v1138
          %vm1185 = vcmp.eq.f32.partialorder %v1121, %v1141
          %vm1186 = vcmp.eq.f32.partialorder %v1122, %v1144
          %vm1187 = vcmp.eq.f32.partialorder %v1123, %v1147
          %vm1188 = vcmp.eq.f32.partialorder %v1124, %v1150
          %vm1189 = vcmp.eq.f32.partialorder %v1125, %v1153
          %vm1190 = vcmp.eq.f32.partialorder %v1126, %v1156
          %vm1191 = vcmp.eq.f32.partialorder %v1127, %v1159
          %vm1192 = vcmp.eq.f32.partialorder %v1128, %v1162
          %vm1193 = vcmp.eq.f32.partialorder %v1129, %v1165
          %vm1194 = vcmp.eq.f32.partialorder %v1130, %v1168
          %vm1195 = vcmp.eq.f32.partialorder %v1131, %v1171
          %vm1196 = vcmp.eq.f32.partialorder %v1132, %v1174
          %vm1197 = vcmp.eq.f32.partialorder %v1133, %v1177
          %vm1198 = vcmp.eq.f32.partialorder %v1134, %v1180
          %vm1199 = vcmp.eq.f32.partialorder %v1135, %v1183
          %v1200 = vsel %vm1184, %v767, 4
          %v1201 = vsel %vm1185, %v767, 4
          %v1202 = vsel %vm1186, %v767, 4
          %v1203 = vsel %vm1187, %v767, 4
          %v1204 = vsel %vm1188, %v767, 4
          %v1205 = vsel %vm1189, %v767, 4
          %v1206 = vsel %vm1190, %v767, 4
          %v1207 = vsel %vm1191, %v767, 4
          %v1208 = vsel %vm1192, %v767, 4
          %v1209 = vsel %vm1193, %v767, 4
          %v1210 = vsel %vm1194, %v767, 4
          %v1211 = vsel %vm1195, %v767, 4
          %v1212 = vsel %vm1196, %v767, 4
          %v1213 = vsel %vm1197, %v767, 4
          %v1214 = vsel %vm1198, %v767, 4
          %v1215 = vsel %vm1199, %v767, 4
          %v1216 = vsel %vm381, %v1200, 2147483647
          %v1217 = vand.u32 %v1216, 65535
          %v1218 = vshra.s32 %v1216, 16
          %v1219 = vcvt.s32.f32 %v1217
          %v1220 = vcvt.s32.f32 %v1218
          %1221 = vmin.xlane.f32.xlu0 %v1220
          %v1222 = vpop.xlane.xlu0 %1221
          %vm1223 = vcmp.eq.f32.partialorder %v1220, %v1222
          %v1224 = vsel %vm1223, %v1219, inf
          %1225 = vmin.xlane.f32.xlu0 %v1224
          %v1226 = vpop.xlane.xlu0 %1225
          %v1227 = vcvt.f32.s32 %v1226
          %v1228 = vcvt.f32.s32 %v1222
          %v1229 = vshll.u32 %v1228, 16
          %v1230 = vadd.s32 %v1229, %v1227
          %v1231 = vsel %vm381, %v1201, 2147483647
          %v1232 = vand.u32 %v1231, 65535
          %v1233 = vshra.s32 %v1231, 16
          %v1234 = vcvt.s32.f32 %v1232
          %v1235 = vcvt.s32.f32 %v1233
          %1236 = vmin.xlane.f32.xlu0 %v1235
          %v1237 = vpop.xlane.xlu0 %1236
          %vm1238 = vcmp.eq.f32.partialorder %v1235, %v1237
          %v1239 = vsel %vm1238, %v1234, inf
          %1240 = vmin.xlane.f32.xlu0 %v1239
          %v1241 = vpop.xlane.xlu0 %1240
          %v1242 = vcvt.f32.s32 %v1241
          %v1243 = vcvt.f32.s32 %v1237
          %v1244 = vshll.u32 %v1243, 16
          %v1245 = vadd.s32 %v1244, %v1242
          %v1246 = vsel %vm381, %v1202, 2147483647
          %v1247 = vand.u32 %v1246, 65535
          %v1248 = vshra.s32 %v1246, 16
          %v1249 = vcvt.s32.f32 %v1247
          %v1250 = vcvt.s32.f32 %v1248
          %1251 = vmin.xlane.f32.xlu0 %v1250
          %v1252 = vpop.xlane.xlu0 %1251
          %vm1253 = vcmp.eq.f32.partialorder %v1250, %v1252
          %v1254 = vsel %vm1253, %v1249, inf
          %1255 = vmin.xlane.f32.xlu0 %v1254
          %v1256 = vpop.xlane.xlu0 %1255
          %v1257 = vcvt.f32.s32 %v1256
          %v1258 = vcvt.f32.s32 %v1252
          %v1259 = vshll.u32 %v1258, 16
          %v1260 = vadd.s32 %v1259, %v1257
          %v1261 = vsel %vm381, %v1203, 2147483647
          %v1262 = vand.u32 %v1261, 65535
          %v1263 = vshra.s32 %v1261, 16
          %v1264 = vcvt.s32.f32 %v1262
          %v1265 = vcvt.s32.f32 %v1263
          %1266 = vmin.xlane.f32.xlu0 %v1265
          %v1267 = vpop.xlane.xlu0 %1266
          %vm1268 = vcmp.eq.f32.partialorder %v1265, %v1267
          %v1269 = vsel %vm1268, %v1264, inf
          %1270 = vmin.xlane.f32.xlu0 %v1269
          %v1271 = vpop.xlane.xlu0 %1270
          %v1272 = vcvt.f32.s32 %v1271
          %v1273 = vcvt.f32.s32 %v1267
          %v1274 = vshll.u32 %v1273, 16
          %v1275 = vadd.s32 %v1274, %v1272
          %v1276 = vsel %vm381, %v1204, 2147483647
          %v1277 = vand.u32 %v1276, 65535
          %v1278 = vshra.s32 %v1276, 16
          %v1279 = vcvt.s32.f32 %v1277
          %v1280 = vcvt.s32.f32 %v1278
          %1281 = vmin.xlane.f32.xlu0 %v1280
          %v1282 = vpop.xlane.xlu0 %1281
          %vm1283 = vcmp.eq.f32.partialorder %v1280, %v1282
          %v1284 = vsel %vm1283, %v1279, inf
          %1285 = vmin.xlane.f32.xlu0 %v1284
          %v1286 = vpop.xlane.xlu0 %1285
          %v1287 = vcvt.f32.s32 %v1286
          %v1288 = vcvt.f32.s32 %v1282
          %v1289 = vshll.u32 %v1288, 16
          %v1290 = vadd.s32 %v1289, %v1287
          %v1291 = vsel %vm381, %v1205, 2147483647
          %v1292 = vand.u32 %v1291, 65535
          %v1293 = vshra.s32 %v1291, 16
          %v1294 = vcvt.s32.f32 %v1292
          %v1295 = vcvt.s32.f32 %v1293
          %1296 = vmin.xlane.f32.xlu0 %v1295
          %v1297 = vpop.xlane.xlu0 %1296
          %vm1298 = vcmp.eq.f32.partialorder %v1295, %v1297
          %v1299 = vsel %vm1298, %v1294, inf
          %1300 = vmin.xlane.f32.xlu0 %v1299
          %v1301 = vpop.xlane.xlu0 %1300
          %v1302 = vcvt.f32.s32 %v1301
          %v1303 = vcvt.f32.s32 %v1297
          %v1304 = vshll.u32 %v1303, 16
          %v1305 = vadd.s32 %v1304, %v1302
          %v1306 = vsel %vm381, %v1206, 2147483647
          %v1307 = vand.u32 %v1306, 65535
          %v1308 = vshra.s32 %v1306, 16
          %v1309 = vcvt.s32.f32 %v1307
          %v1310 = vcvt.s32.f32 %v1308
          %1311 = vmin.xlane.f32.xlu0 %v1310
          %v1312 = vpop.xlane.xlu0 %1311
          %vm1313 = vcmp.eq.f32.partialorder %v1310, %v1312
          %v1314 = vsel %vm1313, %v1309, inf
          %1315 = vmin.xlane.f32.xlu0 %v1314
          %v1316 = vpop.xlane.xlu0 %1315
          %v1317 = vcvt.f32.s32 %v1316
          %v1318 = vcvt.f32.s32 %v1312
          %v1319 = vshll.u32 %v1318, 16
          %v1320 = vadd.s32 %v1319, %v1317
          %v1321 = vsel %vm381, %v1207, 2147483647
          %v1322 = vand.u32 %v1321, 65535
          %v1323 = vshra.s32 %v1321, 16
          %v1324 = vcvt.s32.f32 %v1322
          %v1325 = vcvt.s32.f32 %v1323
          %1326 = vmin.xlane.f32.xlu0 %v1325
          %v1327 = vpop.xlane.xlu0 %1326
          %vm1328 = vcmp.eq.f32.partialorder %v1325, %v1327
          %v1329 = vsel %vm1328, %v1324, inf
          %1330 = vmin.xlane.f32.xlu0 %v1329
          %v1331 = vpop.xlane.xlu0 %1330
          %v1332 = vcvt.f32.s32 %v1331
          %v1333 = vcvt.f32.s32 %v1327
          %v1334 = vshll.u32 %v1333, 16
          %v1335 = vadd.s32 %v1334, %v1332
          %v1336 = vsel %vm381, %v1208, 2147483647
          %v1337 = vand.u32 %v1336, 65535
          %v1338 = vshra.s32 %v1336, 16
          %v1339 = vcvt.s32.f32 %v1337
          %v1340 = vcvt.s32.f32 %v1338
          %1341 = vmin.xlane.f32.xlu0 %v1340
          %v1342 = vpop.xlane.xlu0 %1341
          %vm1343 = vcmp.eq.f32.partialorder %v1340, %v1342
          %v1344 = vsel %vm1343, %v1339, inf
          %1345 = vmin.xlane.f32.xlu0 %v1344
          %v1346 = vpop.xlane.xlu0 %1345
          %v1347 = vcvt.f32.s32 %v1346
          %v1348 = vcvt.f32.s32 %v1342
          %v1349 = vshll.u32 %v1348, 16
          %v1350 = vadd.s32 %v1349, %v1347
          %v1351 = vsel %vm381, %v1209, 2147483647
          %v1352 = vand.u32 %v1351, 65535
          %v1353 = vshra.s32 %v1351, 16
          %v1354 = vcvt.s32.f32 %v1352
          %v1355 = vcvt.s32.f32 %v1353
          %1356 = vmin.xlane.f32.xlu0 %v1355
          %v1357 = vpop.xlane.xlu0 %1356
          %vm1358 = vcmp.eq.f32.partialorder %v1355, %v1357
          %v1359 = vsel %vm1358, %v1354, inf
          %1360 = vmin.xlane.f32.xlu0 %v1359
          %v1361 = vpop.xlane.xlu0 %1360
          %v1362 = vcvt.f32.s32 %v1361
          %v1363 = vcvt.f32.s32 %v1357
          %v1364 = vshll.u32 %v1363, 16
          %v1365 = vadd.s32 %v1364, %v1362
          %v1366 = vsel %vm381, %v1210, 2147483647
          %v1367 = vand.u32 %v1366, 65535
          %v1368 = vshra.s32 %v1366, 16
          %v1369 = vcvt.s32.f32 %v1367
          %v1370 = vcvt.s32.f32 %v1368
          %1371 = vmin.xlane.f32.xlu0 %v1370
          %v1372 = vpop.xlane.xlu0 %1371
          %vm1373 = vcmp.eq.f32.partialorder %v1370, %v1372
          %v1374 = vsel %vm1373, %v1369, inf
          %1375 = vmin.xlane.f32.xlu0 %v1374
          %v1376 = vpop.xlane.xlu0 %1375
          %v1377 = vcvt.f32.s32 %v1376
          %v1378 = vcvt.f32.s32 %v1372
          %v1379 = vshll.u32 %v1378, 16
          %v1380 = vadd.s32 %v1379, %v1377
          %v1381 = vsel %vm381, %v1211, 2147483647
          %v1382 = vand.u32 %v1381, 65535
          %v1383 = vshra.s32 %v1381, 16
          %v1384 = vcvt.s32.f32 %v1382
          %v1385 = vcvt.s32.f32 %v1383
          %1386 = vmin.xlane.f32.xlu0 %v1385
          %v1387 = vpop.xlane.xlu0 %1386
          %vm1388 = vcmp.eq.f32.partialorder %v1385, %v1387
          %v1389 = vsel %vm1388, %v1384, inf
          %1390 = vmin.xlane.f32.xlu0 %v1389
          %v1391 = vpop.xlane.xlu0 %1390
          %v1392 = vcvt.f32.s32 %v1391
          %v1393 = vcvt.f32.s32 %v1387
          %v1394 = vshll.u32 %v1393, 16
          %v1395 = vadd.s32 %v1394, %v1392
          %v1396 = vsel %vm381, %v1212, 2147483647
          %v1397 = vand.u32 %v1396, 65535
          %v1398 = vshra.s32 %v1396, 16
          %v1399 = vcvt.s32.f32 %v1397
          %v1400 = vcvt.s32.f32 %v1398
          %1401 = vmin.xlane.f32.xlu0 %v1400
          %v1402 = vpop.xlane.xlu0 %1401
          %vm1403 = vcmp.eq.f32.partialorder %v1400, %v1402
          %v1404 = vsel %vm1403, %v1399, inf
          %1405 = vmin.xlane.f32.xlu0 %v1404
          %v1406 = vpop.xlane.xlu0 %1405
          %v1407 = vcvt.f32.s32 %v1406
          %v1408 = vcvt.f32.s32 %v1402
          %v1409 = vshll.u32 %v1408, 16
          %v1410 = vadd.s32 %v1409, %v1407
          %v1411 = vsel %vm381, %v1213, 2147483647
          %v1412 = vand.u32 %v1411, 65535
          %v1413 = vshra.s32 %v1411, 16
          %v1414 = vcvt.s32.f32 %v1412
          %v1415 = vcvt.s32.f32 %v1413
          %1416 = vmin.xlane.f32.xlu0 %v1415
          %v1417 = vpop.xlane.xlu0 %1416
          %vm1418 = vcmp.eq.f32.partialorder %v1415, %v1417
          %v1419 = vsel %vm1418, %v1414, inf
          %1420 = vmin.xlane.f32.xlu0 %v1419
          %v1421 = vpop.xlane.xlu0 %1420
          %v1422 = vcvt.f32.s32 %v1421
          %v1423 = vcvt.f32.s32 %v1417
          %v1424 = vshll.u32 %v1423, 16
          %v1425 = vadd.s32 %v1424, %v1422
          %v1426 = vsel %vm381, %v1214, 2147483647
          %v1427 = vand.u32 %v1426, 65535
          %v1428 = vshra.s32 %v1426, 16
          %v1429 = vcvt.s32.f32 %v1427
          %v1430 = vcvt.s32.f32 %v1428
          %1431 = vmin.xlane.f32.xlu0 %v1430
          %v1432 = vpop.xlane.xlu0 %1431
          %vm1433 = vcmp.eq.f32.partialorder %v1430, %v1432
          %v1434 = vsel %vm1433, %v1429, inf
          %1435 = vmin.xlane.f32.xlu0 %v1434
          %v1436 = vpop.xlane.xlu0 %1435
          %v1437 = vcvt.f32.s32 %v1436
          %v1438 = vcvt.f32.s32 %v1432
          %v1439 = vshll.u32 %v1438, 16
          %v1440 = vadd.s32 %v1439, %v1437
          %v1441 = vsel %vm381, %v1215, 2147483647
          %v1442 = vand.u32 %v1441, 65535
          %v1443 = vshra.s32 %v1441, 16
          %v1444 = vcvt.s32.f32 %v1442
          %v1445 = vcvt.s32.f32 %v1443
          %1446 = vmin.xlane.f32.xlu0 %v1445
          %v1447 = vpop.xlane.xlu0 %1446
          %vm1448 = vcmp.eq.f32.partialorder %v1445, %v1447
          %v1449 = vsel %vm1448, %v1444, inf
          %1450 = vmin.xlane.f32.xlu0 %v1449
          %v1451 = vpop.xlane.xlu0 %1450
          %v1452 = vcvt.f32.s32 %v1451
          %v1453 = vcvt.f32.s32 %v1447
          %v1454 = vshll.u32 %v1453, 16
          %v1455 = vadd.s32 %v1454, %v1452
          %vm1456 = vcmp.eq.s32.totalorder %v767, %v1230
          %vm1457 = vcmp.eq.s32.totalorder %v767, %v1245
          %vm1458 = vcmp.eq.s32.totalorder %v767, %v1260
          %vm1459 = vcmp.eq.s32.totalorder %v767, %v1275
          %vm1460 = vcmp.eq.s32.totalorder %v767, %v1290
          %vm1461 = vcmp.eq.s32.totalorder %v767, %v1305
          %vm1462 = vcmp.eq.s32.totalorder %v767, %v1320
          %vm1463 = vcmp.eq.s32.totalorder %v767, %v1335
          %vm1464 = vcmp.eq.s32.totalorder %v767, %v1350
          %vm1465 = vcmp.eq.s32.totalorder %v767, %v1365
          %vm1466 = vcmp.eq.s32.totalorder %v767, %v1380
          %vm1467 = vcmp.eq.s32.totalorder %v767, %v1395
          %vm1468 = vcmp.eq.s32.totalorder %v767, %v1410
          %vm1469 = vcmp.eq.s32.totalorder %v767, %v1425
          %vm1470 = vcmp.eq.s32.totalorder %v767, %v1440
          %vm1471 = vcmp.eq.s32.totalorder %v767, %v1455
          %v1472 = vsel %vm1456, %v540, %v1104
          %v1473 = vsel %vm1457, %v555, %v1105
          %v1474 = vsel %vm1458, %v570, %v1106
          %v1475 = vsel %vm1459, %v585, %v1107
          %v1476 = vsel %vm1460, %v600, %v1108
          %v1477 = vsel %vm1461, %v615, %v1109
          %v1478 = vsel %vm1462, %v630, %v1110
          %v1479 = vsel %vm1463, %v645, %v1111
          %v1480 = vsel %vm1464, %v660, %v1112
          %v1481 = vsel %vm1465, %v675, %v1113
          %v1482 = vsel %vm1466, %v690, %v1114
          %v1483 = vsel %vm1467, %v705, %v1115
          %v1484 = vsel %vm1468, %v720, %v1116
          %v1485 = vsel %vm1469, %v735, %v1117
          %v1486 = vsel %vm1470, %v750, %v1118
          %v1487 = vsel %vm1471, %v765, %v1119
          %1488 = vst.msk [vmem:[#allocation2] sm:$0xff] %vm381, %v1472
          %1489 = vst.msk [vmem:[#allocation2 + $0x8] sm:$0xff] %vm381, %v1473
          %1490 = vst.msk [vmem:[#allocation2 + $0x10] sm:$0xff] %vm381, %v1474
          %1491 = vst.msk [vmem:[#allocation2 + $0x18] sm:$0xff] %vm381, %v1475
          %1492 = vst.msk [vmem:[#allocation2 + $0x20] sm:$0xff] %vm381, %v1476
          %1493 = vst.msk [vmem:[#allocation2 + $0x28] sm:$0xff] %vm381, %v1477
          %1494 = vst.msk [vmem:[#allocation2 + $0x30] sm:$0xff] %vm381, %v1478
          %1495 = vst.msk [vmem:[#allocation2 + $0x38] sm:$0xff] %vm381, %v1479
          %1496 = vst.msk [vmem:[#allocation2 + $0x40] sm:$0xff] %vm381, %v1480
          %1497 = vst.msk [vmem:[#allocation2 + $0x48] sm:$0xff] %vm381, %v1481
          %1498 = vst.msk [vmem:[#allocation2 + $0x50] sm:$0xff] %vm381, %v1482
          %1499 = vst.msk [vmem:[#allocation2 + $0x58] sm:$0xff] %vm381, %v1483
          %1500 = vst.msk [vmem:[#allocation2 + $0x60] sm:$0xff] %vm381, %v1484
          %1501 = vst.msk [vmem:[#allocation2 + $0x68] sm:$0xff] %vm381, %v1485
          %1502 = vst.msk [vmem:[#allocation2 + $0x70] sm:$0xff] %vm381, %v1486
          %1503 = vst.msk [vmem:[#allocation2 + $0x78] sm:$0xff] %vm381, %v1487
          %v1504 = vld [vmem:[%s241] sm:$0xff]
          %v1505 = vld [vmem:[%s241 + $0x8] sm:$0xff]
          %v1506 = vld [vmem:[%s241 + $0x10] sm:$0xff]
          %v1507 = vld [vmem:[%s241 + $0x18] sm:$0xff]
          %v1508 = vld [vmem:[%s241 + $0x20] sm:$0xff]
          %v1509 = vld [vmem:[%s241 + $0x28] sm:$0xff]
          %v1510 = vld [vmem:[%s241 + $0x30] sm:$0xff]
          %v1511 = vld [vmem:[%s241 + $0x38] sm:$0xff]
          %v1512 = vld [vmem:[%s241 + $0x40] sm:$0xff]
          %v1513 = vld [vmem:[%s241 + $0x48] sm:$0xff]
          %v1514 = vld [vmem:[%s241 + $0x50] sm:$0xff]
          %v1515 = vld [vmem:[%s241 + $0x58] sm:$0xff]
          %v1516 = vld [vmem:[%s241 + $0x60] sm:$0xff]
          %v1517 = vld [vmem:[%s241 + $0x68] sm:$0xff]
          %v1518 = vld [vmem:[%s241 + $0x70] sm:$0xff]
          %v1519 = vld [vmem:[%s241 + $0x78] sm:$0xff]
          %v1520 = vpack.c.bf16 %v1504, %v1504
          %v1521 = vpack.c.bf16 %v1505, %v1505
          %v1522 = vpack.c.bf16 %v1506, %v1506
          %v1523 = vpack.c.bf16 %v1507, %v1507
          %v1524 = vpack.c.bf16 %v1508, %v1508
          %v1525 = vpack.c.bf16 %v1509, %v1509
          %v1526 = vpack.c.bf16 %v1510, %v1510
          %v1527 = vpack.c.bf16 %v1511, %v1511
          %v1528 = vpack.c.bf16 %v1512, %v1512
          %v1529 = vpack.c.bf16 %v1513, %v1513
          %v1530 = vpack.c.bf16 %v1514, %v1514
          %v1531 = vpack.c.bf16 %v1515, %v1515
          %v1532 = vpack.c.bf16 %v1516, %v1516
          %v1533 = vpack.c.bf16 %v1517, %v1517
          %v1534 = vpack.c.bf16 %v1518, %v1518
          %v1535 = vpack.c.bf16 %v1519, %v1519
          %1536 = vst [vmem:[#allocation3] sm:$0xf] %v1520
          %1537 = vst [vmem:[#allocation3 + $0x4] sm:$0xf] %v1521
          %1538 = vst [vmem:[#allocation3 + $0x8] sm:$0xf] %v1522
          %1539 = vst [vmem:[#allocation3 + $0xc] sm:$0xf] %v1523
          %1540 = vst [vmem:[#allocation3 + $0x10] sm:$0xf] %v1524
          %1541 = vst [vmem:[#allocation3 + $0x14] sm:$0xf] %v1525
          %1542 = vst [vmem:[#allocation3 + $0x18] sm:$0xf] %v1526
          %1543 = vst [vmem:[#allocation3 + $0x1c] sm:$0xf] %v1527
          %1544 = vst [vmem:[#allocation3 + $0x20] sm:$0xf] %v1528
          %1545 = vst [vmem:[#allocation3 + $0x24] sm:$0xf] %v1529
          %1546 = vst [vmem:[#allocation3 + $0x28] sm:$0xf] %v1530
          %1547 = vst [vmem:[#allocation3 + $0x2c] sm:$0xf] %v1531
          %1548 = vst [vmem:[#allocation3 + $0x30] sm:$0xf] %v1532
          %1549 = vst [vmem:[#allocation3 + $0x34] sm:$0xf] %v1533
          %1550 = vst [vmem:[#allocation3 + $0x38] sm:$0xf] %v1534
          %1551 = vst [vmem:[#allocation3 + $0x3c] sm:$0xf] %v1535
          %1552 = vst [vmem:[%s273] sm:$0xff] 0.0
          %1553 = vst [vmem:[%s273 + $0x8] sm:$0xff] 0.0
          %1554 = vst [vmem:[%s273 + $0x10] sm:$0xff] 0.0
          %1555 = vst [vmem:[%s273 + $0x18] sm:$0xff] 0.0
          %1556 = vst [vmem:[%s273 + $0x20] sm:$0xff] 0.0
          %1557 = vst [vmem:[%s273 + $0x28] sm:$0xff] 0.0
          %1558 = vst [vmem:[%s273 + $0x30] sm:$0xff] 0.0
          %1559 = vst [vmem:[%s273 + $0x38] sm:$0xff] 0.0
          %1560 = vst [vmem:[%s273 + $0x40] sm:$0xff] 0.0
          %1561 = vst [vmem:[%s273 + $0x48] sm:$0xff] 0.0
          %1562 = vst [vmem:[%s273 + $0x50] sm:$0xff] 0.0
          %1563 = vst [vmem:[%s273 + $0x58] sm:$0xff] 0.0
          %1564 = vst [vmem:[%s273 + $0x60] sm:$0xff] 0.0
          %1565 = vst [vmem:[%s273 + $0x68] sm:$0xff] 0.0
          %1566 = vst [vmem:[%s273 + $0x70] sm:$0xff] 0.0
          %1567 = vst [vmem:[%s273 + $0x78] sm:$0xff] 0.0
        $region52: #{tpu_custom_call.1} parent=39 // pred_fallthru
          _
        %v1568 = vlaneseq
        %v1569 = vand.u32 %v1568, 127
        %v1570 = vstv %s28
        %vm1571 = vcmp.eq.s32.totalorder %v1569, %v1570
        %v1572 = vld [vmem:[#allocation2] sm:$0xff]
        %v1573 = vld [vmem:[#allocation2 + $0x8] sm:$0xff]
        %v1574 = vld [vmem:[#allocation2 + $0x10] sm:$0xff]
        %v1575 = vld [vmem:[#allocation2 + $0x18] sm:$0xff]
        %v1576 = vld [vmem:[#allocation2 + $0x20] sm:$0xff]
        %v1577 = vld [vmem:[#allocation2 + $0x28] sm:$0xff]
        %v1578 = vld [vmem:[#allocation2 + $0x30] sm:$0xff]
        %v1579 = vld [vmem:[#allocation2 + $0x38] sm:$0xff]
        %v1580 = vld [vmem:[#allocation2 + $0x40] sm:$0xff]
        %v1581 = vld [vmem:[#allocation2 + $0x48] sm:$0xff]
        %v1582 = vld [vmem:[#allocation2 + $0x50] sm:$0xff]
        %v1583 = vld [vmem:[#allocation2 + $0x58] sm:$0xff]
        %v1584 = vld [vmem:[#allocation2 + $0x60] sm:$0xff]
        %v1585 = vld [vmem:[#allocation2 + $0x68] sm:$0xff]
        %v1586 = vld [vmem:[#allocation2 + $0x70] sm:$0xff]
        %v1587 = vld [vmem:[#allocation2 + $0x78] sm:$0xff]
        %v1588 = vsel %vm1571, %v1572, 0.0
        %v1589 = vsel %vm1571, %v1573, 0.0
        %v1590 = vsel %vm1571, %v1574, 0.0
        %v1591 = vsel %vm1571, %v1575, 0.0
        %v1592 = vsel %vm1571, %v1576, 0.0
        %v1593 = vsel %vm1571, %v1577, 0.0
        %v1594 = vsel %vm1571, %v1578, 0.0
        %v1595 = vsel %vm1571, %v1579, 0.0
        %v1596 = vsel %vm1571, %v1580, 0.0
        %v1597 = vsel %vm1571, %v1581, 0.0
        %v1598 = vsel %vm1571, %v1582, 0.0
        %v1599 = vsel %vm1571, %v1583, 0.0
        %v1600 = vsel %vm1571, %v1584, 0.0
        %v1601 = vsel %vm1571, %v1585, 0.0
        %v1602 = vsel %vm1571, %v1586, 0.0
        %v1603 = vsel %vm1571, %v1587, 0.0
        %vm1604 = vcmask 31744
        %v1605 = vsel %vm1604, %v1588, 0.0
        %1606 = vadd.xlane.f32.xlu0 %v1605
        %v1607 = vpop.xlane.xlu0 %1606
        %v1608 = vsel %vm1604, %v1589, 0.0
        %1609 = vadd.xlane.f32.xlu0 %v1608
        %v1610 = vpop.xlane.xlu0 %1609
        %v1611 = vsel %vm1604, %v1590, 0.0
        %1612 = vadd.xlane.f32.xlu0 %v1611
        %v1613 = vpop.xlane.xlu0 %1612
        %v1614 = vsel %vm1604, %v1591, 0.0
        %1615 = vadd.xlane.f32.xlu0 %v1614
        %v1616 = vpop.xlane.xlu0 %1615
        %v1617 = vsel %vm1604, %v1592, 0.0
        %1618 = vadd.xlane.f32.xlu0 %v1617
        %v1619 = vpop.xlane.xlu0 %1618
        %v1620 = vsel %vm1604, %v1593, 0.0
        %1621 = vadd.xlane.f32.xlu0 %v1620
        %v1622 = vpop.xlane.xlu0 %1621
        %v1623 = vsel %vm1604, %v1594, 0.0
        %1624 = vadd.xlane.f32.xlu0 %v1623
        %v1625 = vpop.xlane.xlu0 %1624
        %v1626 = vsel %vm1604, %v1595, 0.0
        %1627 = vadd.xlane.f32.xlu0 %v1626
        %v1628 = vpop.xlane.xlu0 %1627
        %v1629 = vsel %vm1604, %v1596, 0.0
        %1630 = vadd.xlane.f32.xlu0 %v1629
        %v1631 = vpop.xlane.xlu0 %1630
        %v1632 = vsel %vm1604, %v1597, 0.0
        %1633 = vadd.xlane.f32.xlu0 %v1632
        %v1634 = vpop.xlane.xlu0 %1633
        %v1635 = vsel %vm1604, %v1598, 0.0
        %1636 = vadd.xlane.f32.xlu0 %v1635
        %v1637 = vpop.xlane.xlu0 %1636
        %v1638 = vsel %vm1604, %v1599, 0.0
        %1639 = vadd.xlane.f32.xlu0 %v1638
        %v1640 = vpop.xlane.xlu0 %1639
        %v1641 = vsel %vm1604, %v1600, 0.0
        %1642 = vadd.xlane.f32.xlu0 %v1641
        %v1643 = vpop.xlane.xlu0 %1642
        %v1644 = vsel %vm1604, %v1601, 0.0
        %1645 = vadd.xlane.f32.xlu0 %v1644
        %v1646 = vpop.xlane.xlu0 %1645
        %v1647 = vsel %vm1604, %v1602, 0.0
        %1648 = vadd.xlane.f32.xlu0 %v1647
        %v1649 = vpop.xlane.xlu0 %1648
        %v1650 = vsel %vm1604, %v1603, 0.0
        %1651 = vadd.xlane.f32.xlu0 %v1650
        %v1652 = vpop.xlane.xlu0 %1651
        %s1653 = smul.u32 %s28, 16
        %s1654 = smul.addr %s1653, 4
        %s1655 = scalar_lea.vmem [#allocation7], %s1654
        %v1656 = vld [vmem:[%s1655] sm:$0xf]
        %v1657 = vld [vmem:[%s1655 + $0x4] sm:$0xf]
        %v1658 = vld [vmem:[%s1655 + $0x8] sm:$0xf]
        %v1659 = vld [vmem:[%s1655 + $0xc] sm:$0xf]
        %v1660 = vld [vmem:[%s1655 + $0x10] sm:$0xf]
        %v1661 = vld [vmem:[%s1655 + $0x14] sm:$0xf]
        %v1662 = vld [vmem:[%s1655 + $0x18] sm:$0xf]
        %v1663 = vld [vmem:[%s1655 + $0x1c] sm:$0xf]
        %v1664 = vld [vmem:[%s1655 + $0x20] sm:$0xf]
        %v1665 = vld [vmem:[%s1655 + $0x24] sm:$0xf]
        %v1666 = vld [vmem:[%s1655 + $0x28] sm:$0xf]
        %v1667 = vld [vmem:[%s1655 + $0x2c] sm:$0xf]
        %v1668 = vld [vmem:[%s1655 + $0x30] sm:$0xf]
        %v1669 = vld [vmem:[%s1655 + $0x34] sm:$0xf]
        %v1670 = vld [vmem:[%s1655 + $0x38] sm:$0xf]
        %v1671 = vld [vmem:[%s1655 + $0x3c] sm:$0xf]
        %s1672 = scalar_lea.vmem %s4, %s28
        %v1673 = vld [vmem:[%s1672] sm:$0x1]
        %v1674 = vld [vmem:[#allocation3] sm:$0xf]
        %v1675 = vld [vmem:[#allocation3 + $0x4] sm:$0xf]
        %v1676 = vld [vmem:[#allocation3 + $0x8] sm:$0xf]
        %v1677 = vld [vmem:[#allocation3 + $0xc] sm:$0xf]
        %v1678 = vld [vmem:[#allocation3 + $0x10] sm:$0xf]
        %v1679 = vld [vmem:[#allocation3 + $0x14] sm:$0xf]
        %v1680 = vld [vmem:[#allocation3 + $0x18] sm:$0xf]
        %v1681 = vld [vmem:[#allocation3 + $0x1c] sm:$0xf]
        %v1682 = vld [vmem:[#allocation3 + $0x20] sm:$0xf]
        %v1683 = vld [vmem:[#allocation3 + $0x24] sm:$0xf]
        %v1684 = vld [vmem:[#allocation3 + $0x28] sm:$0xf]
        %v1685 = vld [vmem:[#allocation3 + $0x2c] sm:$0xf]
        %v1686 = vld [vmem:[#allocation3 + $0x30] sm:$0xf]
        %v1687 = vld [vmem:[#allocation3 + $0x34] sm:$0xf]
        %v1688 = vld [vmem:[#allocation3 + $0x38] sm:$0xf]
        %v1689 = vld [vmem:[#allocation3 + $0x3c] sm:$0xf]
        %v1691 = vperm.slane %v1673, 0
        %v1709 = vunpack.c.l.b16 %v1674
        %v1710 = vunpack.c.l.b16 %v1675
        %v1711 = vunpack.c.l.b16 %v1676
        %v1712 = vunpack.c.l.b16 %v1677
        %v1713 = vunpack.c.l.b16 %v1678
        %v1714 = vunpack.c.l.b16 %v1679
        %v1715 = vunpack.c.l.b16 %v1680
        %v1716 = vunpack.c.l.b16 %v1681
        %v1717 = vunpack.c.l.b16 %v1682
        %v1718 = vunpack.c.l.b16 %v1683
        %v1719 = vunpack.c.l.b16 %v1684
        %v1720 = vunpack.c.l.b16 %v1685
        %v1721 = vunpack.c.l.b16 %v1686
        %v1722 = vunpack.c.l.b16 %v1687
        %v1723 = vunpack.c.l.b16 %v1688
        %v1724 = vunpack.c.l.b16 %v1689
        %v1725 = vpack.c.b16 %v1710, %v1709
        %v1726 = vpack.c.b16 %v1712, %v1711
        %v1727 = vpack.c.b16 %v1714, %v1713
        %v1728 = vpack.c.b16 %v1716, %v1715
        %v1729 = vpack.c.b16 %v1718, %v1717
        %v1730 = vpack.c.b16 %v1720, %v1719
        %v1731 = vpack.c.b16 %v1722, %v1721
        %v1732 = vpack.c.b16 %v1724, %v1723
        %v1757 = vunpack.c.l.b16 %v1656
        %v1758 = vunpack.c.l.b16 %v1657
        %v1759 = vunpack.c.l.b16 %v1658
        %v1760 = vunpack.c.l.b16 %v1659
        %v1761 = vunpack.c.l.b16 %v1660
        %v1762 = vunpack.c.l.b16 %v1661
        %v1763 = vunpack.c.l.b16 %v1662
        %v1764 = vunpack.c.l.b16 %v1663
        %v1765 = vunpack.c.l.b16 %v1664
        %v1766 = vunpack.c.l.b16 %v1665
        %v1767 = vunpack.c.l.b16 %v1666
        %v1768 = vunpack.c.l.b16 %v1667
        %v1769 = vunpack.c.l.b16 %v1668
        %v1770 = vunpack.c.l.b16 %v1669
        %v1771 = vunpack.c.l.b16 %v1670
        %v1772 = vunpack.c.l.b16 %v1671
        %v1773 = vpack.c.b16 %v1758, %v1757
        %v1774 = vpack.c.b16 %v1760, %v1759
        %v1775 = vpack.c.b16 %v1762, %v1761
        %v1776 = vpack.c.b16 %v1764, %v1763
        %v1777 = vpack.c.b16 %v1766, %v1765
        %v1778 = vpack.c.b16 %v1768, %v1767
        %v1779 = vpack.c.b16 %v1770, %v1769
        %v1780 = vpack.c.b16 %v1772, %v1771
        %1789 = vmatpush.bf16.msra.mxu0 %v1780
        %1790 = vmatpush.bf16.msra.mxu0 %v1779
        %1791 = vmatpush.bf16.msra.mxu0 %v1778
        %1792 = vmatpush.bf16.msra.mxu0 %v1777
        %1793 = vmatpush.bf16.msra.mxu0 %v1776
        %1794 = vmatpush.bf16.msra.mxu0 %v1775
        %1795 = vmatpush.bf16.msra.mxu0 %v1774
        %1796 = vmatpush.bf16.msra.mxu0 %v1773
        %1797 = vmatmul.bf16.gmra.mxu0 %v1725
        %v1798 = vpop.f32.mrf.mxu0
        %v1799 = vadd.f32 %v1691, %v1798
        %v1800 = vpop.f32.mrf.mxu0
        %v1801 = vadd.f32 %v1691, %v1800
        %1802 = vmatmul.bf16.gmra.mxu0 %v1726
        %v1803 = vpop.f32.mrf.mxu0
        %v1804 = vadd.f32 %v1691, %v1803
        %v1805 = vpop.f32.mrf.mxu0
        %v1806 = vadd.f32 %v1691, %v1805
        %1807 = vmatmul.bf16.gmra.mxu0 %v1727
        %v1808 = vpop.f32.mrf.mxu0
        %v1809 = vadd.f32 %v1691, %v1808
        %v1810 = vpop.f32.mrf.mxu0
        %v1811 = vadd.f32 %v1691, %v1810
        %1812 = vmatmul.bf16.gmra.mxu0 %v1728
        %v1813 = vpop.f32.mrf.mxu0
        %v1814 = vadd.f32 %v1691, %v1813
        %v1815 = vpop.f32.mrf.mxu0
        %v1816 = vadd.f32 %v1691, %v1815
        %1817 = vmatmul.bf16.gmra.mxu0 %v1729
        %v1818 = vpop.f32.mrf.mxu0
        %v1819 = vadd.f32 %v1691, %v1818
        %v1820 = vpop.f32.mrf.mxu0
        %v1821 = vadd.f32 %v1691, %v1820
        %1822 = vmatmul.bf16.gmra.mxu0 %v1730
        %v1823 = vpop.f32.mrf.mxu0
        %v1824 = vadd.f32 %v1691, %v1823
        %v1825 = vpop.f32.mrf.mxu0
        %v1826 = vadd.f32 %v1691, %v1825
        %1827 = vmatmul.bf16.gmra.mxu0 %v1731
        %v1828 = vpop.f32.mrf.mxu0
        %v1829 = vadd.f32 %v1691, %v1828
        %v1830 = vpop.f32.mrf.mxu0
        %v1831 = vadd.f32 %v1691, %v1830
        %1832 = vmatmul.bf16.gmra.mxu0 %v1732
        %v1833 = vpop.f32.mrf.mxu0
        %v1834 = vadd.f32 %v1691, %v1833
        %v1835 = vpop.f32.mrf.mxu0
        %v1836 = vadd.f32 %v1691, %v1835
        %1837 = vdwg.mxu0
        %v1838 = vld [vmem:[%s273] sm:$0xff]
        %v1839 = vld [vmem:[%s273 + $0x8] sm:$0xff]
        %v1840 = vld [vmem:[%s273 + $0x10] sm:$0xff]
        %v1841 = vld [vmem:[%s273 + $0x18] sm:$0xff]
        %v1842 = vld [vmem:[%s273 + $0x20] sm:$0xff]
        %v1843 = vld [vmem:[%s273 + $0x28] sm:$0xff]
        %v1844 = vld [vmem:[%s273 + $0x30] sm:$0xff]
        %v1845 = vld [vmem:[%s273 + $0x38] sm:$0xff]
        %v1846 = vld [vmem:[%s273 + $0x40] sm:$0xff]
        %v1847 = vld [vmem:[%s273 + $0x48] sm:$0xff]
        %v1848 = vld [vmem:[%s273 + $0x50] sm:$0xff]
        %v1849 = vld [vmem:[%s273 + $0x58] sm:$0xff]
        %v1850 = vld [vmem:[%s273 + $0x60] sm:$0xff]
        %v1851 = vld [vmem:[%s273 + $0x68] sm:$0xff]
        %v1852 = vld [vmem:[%s273 + $0x70] sm:$0xff]
        %v1853 = vld [vmem:[%s273 + $0x78] sm:$0xff]
        %v1854 = vmul.f32 %v1799, %v1607
        %v1855 = vmul.f32 %v1801, %v1610
        %v1856 = vmul.f32 %v1804, %v1613
        %v1857 = vmul.f32 %v1806, %v1616
        %v1858 = vmul.f32 %v1809, %v1619
        %v1859 = vmul.f32 %v1811, %v1622
        %v1860 = vmul.f32 %v1814, %v1625
        %v1861 = vmul.f32 %v1816, %v1628
        %v1862 = vmul.f32 %v1819, %v1631
        %v1863 = vmul.f32 %v1821, %v1634
        %v1864 = vmul.f32 %v1824, %v1637
        %v1865 = vmul.f32 %v1826, %v1640
        %v1866 = vmul.f32 %v1829, %v1643
        %v1867 = vmul.f32 %v1831, %v1646
        %v1868 = vmul.f32 %v1834, %v1649
        %v1869 = vmul.f32 %v1836, %v1652
        %v1870 = vadd.f32 %v1838, %v1854
        %v1871 = vadd.f32 %v1839, %v1855
        %v1872 = vadd.f32 %v1840, %v1856
        %v1873 = vadd.f32 %v1841, %v1857
        %v1874 = vadd.f32 %v1842, %v1858
        %v1875 = vadd.f32 %v1843, %v1859
        %v1876 = vadd.f32 %v1844, %v1860
        %v1877 = vadd.f32 %v1845, %v1861
        %v1878 = vadd.f32 %v1846, %v1862
        %v1879 = vadd.f32 %v1847, %v1863
        %v1880 = vadd.f32 %v1848, %v1864
        %v1881 = vadd.f32 %v1849, %v1865
        %v1882 = vadd.f32 %v1850, %v1866
        %v1883 = vadd.f32 %v1851, %v1867
        %v1884 = vadd.f32 %v1852, %v1868
        %v1885 = vadd.f32 %v1853, %v1869
        %1886 = vst [vmem:[%s273] sm:$0xff] %v1870
        %1887 = vst [vmem:[%s273 + $0x8] sm:$0xff] %v1871
        %1888 = vst [vmem:[%s273 + $0x10] sm:$0xff] %v1872
        %1889 = vst [vmem:[%s273 + $0x18] sm:$0xff] %v1873
        %1890 = vst [vmem:[%s273 + $0x20] sm:$0xff] %v1874
        %1891 = vst [vmem:[%s273 + $0x28] sm:$0xff] %v1875
        %1892 = vst [vmem:[%s273 + $0x30] sm:$0xff] %v1876
        %1893 = vst [vmem:[%s273 + $0x38] sm:$0xff] %v1877
        %1894 = vst [vmem:[%s273 + $0x40] sm:$0xff] %v1878
        %1895 = vst [vmem:[%s273 + $0x48] sm:$0xff] %v1879
        %1896 = vst [vmem:[%s273 + $0x50] sm:$0xff] %v1880
        %1897 = vst [vmem:[%s273 + $0x58] sm:$0xff] %v1881
        %1898 = vst [vmem:[%s273 + $0x60] sm:$0xff] %v1882
        %1899 = vst [vmem:[%s273 + $0x68] sm:$0xff] %v1883
        %1900 = vst [vmem:[%s273 + $0x70] sm:$0xff] %v1884
        %1901 = vst [vmem:[%s273 + $0x78] sm:$0xff] %v1885
        %s1902 = sand.u32 %s153, 1
        %s1903 = scalar_lea.sflag [#allocation6], %s1902
        %s1904 = sand.u32 %s153, 1
        %s1905 = smul.addr %s1904, 128
        %s1906 = scalar_lea.vmem [#allocation9], %s1905
        // Predicated region
        $region53: #{tpu_custom_call.1} parent=39 // pred_check
          %p1907 = pneg %p163
        $region54: #{tpu_custom_call.1} parent=39 // pred_check_branch
          %1909 = sbr.rel (%p1907) target = $region56
        $region55: #{tpu_custom_call.1} parent=39 // pred_region
          %s1910 = smul.u32 16, %s27
          %1912 = vsyncadd %s1903, 0
          %s1913 = smul.addr %s1910, 8
          %s1914 = scalar_lea.hbm %s5, %s1913
          %s1915 = sshll.u32 %s1906, 4
          %s1916 = int_to_ptr.vmem [resolvable:$true] %s1915
          %s1917 = sshll.u32 %s1914, 4
          %s1918 = int_to_ptr.hbm [resolvable:$true] %s1917
          %1923 = dma.vmem_to_hbm [thread:$0]  %s1916, 2048, %s1918, %s1903, 128, 128, 8
        $region56: #{tpu_custom_call.1} parent=39 // pred_fallthru
          _
      $region40: #{tpu_custom_call.1} parent=5 // pred_fallthru
        _
      %p1924 = scmp.le.s32.totalorder 2, %s18
      // Predicated region
      $region57: #{tpu_custom_call.1} parent=5 // pred_check
        %p1925 = pneg %p1924
      $region58: #{tpu_custom_call.1} parent=5 // pred_check_branch
        %1927 = sbr.rel (%p1925) target = $region60
      $region59: #{tpu_custom_call.1} parent=5 // pred_region
        %s1928 = ssub.s32 %s18, 2
        // Predicated region
        $region61: #{tpu_custom_call.1} parent=59 // pred_check
          %p1929 = pneg %p169
        $region62: #{tpu_custom_call.1} parent=59 // pred_check_branch
          %1931 = sbr.rel (%p1929) target = $region64
        $region63: #{tpu_custom_call.1} parent=59 // pred_region
          %s1932 = sand.u32 %s154, 1
          %s1933 = scalar_lea.sflag [#allocation6], %s1932
          %s1934 = sand.u32 %s154, 1
          %s1935 = smul.addr %s1934, 128
          %s1936 = scalar_lea.vmem [#allocation9], %s1935
          %1938 = dma.done %s1933, 2048
        $region64: #{tpu_custom_call.1} parent=59 // pred_fallthru
          _
      $region60: #{tpu_custom_call.1} parent=5 // pred_fallthru
        _
    $region6: #{tpu_custom_call.1} parent=1 // loop_footer
      %s22 = sadd.s32 1, %s18
    $region7: #{tpu_custom_call.1} parent=1 // loop_footer_branch
      %17 = sbr.rel target = $region3
    $region8: #{tpu_custom_call.1} parent=1 // loop_exit
      _
    %1939 = vsyncpa [#allocation5], 1
    %s1940 = scalar_lea.sflag [#allocation5], 1
    %1941 = vsyncpa %s1940, 1
    %1942 = vsyncpa [#allocation8], 1
    %1943 = vsyncpa [#allocation6], 1
    %s1944 = scalar_lea.sflag [#allocation6], 1
    %1945 = vsyncpa %s1944, 1

</llo_original>
